<compile_context>
chip_gen: v5e
topology: v5e:2x2
jax: 0.10.0
libtpu: 0.0.40
codegen_flags: <defaults>
</compile_context>

<pallas_src>
import jax
import jax.numpy as jnp
from jax.experimental import pallas as pl
from jax.experimental.pallas import tpu as pltpu

# ---- problem sizes (small, consistent with the module) ----
STATE_SIZE = 10
ACTION_SIZE = 4
IN_DIM = STATE_SIZE + ACTION_SIZE + 1 + 1   # 16 = fc1 input dim
HIDDEN = 128                                # fixed by the module
BATCH = 2
SEQ = 8


def actor_critic_kernel(x_ref, h0_ref, c0_ref,
                        w1_ref, b1_ref,
                        wih_ref, whh_ref, bl_ref,
                        wh_ref, bh_ref,
                        dist_ref, v_ref, hout_ref, cout_ref,
                        r_scratch):
    B, T, H, A = BATCH, SEQ, HIDDEN, ACTION_SIZE
    bf16 = jnp.bfloat16

    # ---- hoisted, time-independent compute (single MXU pushes for all steps) ----
    x_all = x_ref[...].astype(bf16)                              # (T*B, IN), time-major
    z_all = jnp.dot(x_all, w1_ref[...],
                    preferred_element_type=jnp.float32) + b1_ref[...]
    z_all = jnp.maximum(z_all, 0.0)                              # relu(fc1(x)), (T*B, H)
    gates_ih = jnp.dot(z_all.astype(bf16), wih_ref[...],
                       preferred_element_type=jnp.float32) + bl_ref[...]   # (T*B, 4H)

    whh = whh_ref[...]                                           # (H, 4H), bf16
    h = h0_ref[...]                                              # (B, H), f32
    c = c0_ref[...]                                              # (B, H), f32

    # ---- serial recurrence: only h @ W_hh + gate nonlinearities on the path ----
    for t in range(T):                                           # static unroll (T small)
        gates = gates_ih[t * B:(t + 1) * B, :] + jnp.dot(
            h.astype(bf16), whh, preferred_element_type=jnp.float32)       # (B, 4H)
        # PyTorch gate order: i, f, g, o
        i_g = jax.nn.sigmoid(gates[:, 0 * H:1 * H])
        f_g = jax.nn.sigmoid(gates[:, 1 * H:2 * H])
        g_g = jnp.tanh(gates[:, 2 * H:3 * H])
        o_g = jax.nn.sigmoid(gates[:, 3 * H:4 * H])
        c = f_g * c + i_g * g_g
        h = o_g * jnp.tanh(c)
        # rnn_output = relu(rnn_output); stash batch-major for the fused heads
        r_scratch[:, t:t + 1, :] = jnp.reshape(jnp.maximum(h, 0.0), (B, 1, H))

    # ---- fused actor/value heads: one (B*T, H) @ (H, A+1) matmul ----
    r_flat = r_scratch[...].reshape(B * T, H)                    # batch-major rows (b, t)
    head = jnp.dot(r_flat.astype(bf16), wh_ref[...],
                   preferred_element_type=jnp.float32) + bh_ref[...]       # (B*T, A+1)

    # softmax over the flattened (T*A) logits of each batch row
    for b in range(B):
        blk = head[b * T:(b + 1) * T, :A]                        # (T, A) logits of batch b
        m = jnp.max(jnp.max(blk, axis=1, keepdims=True), axis=0, keepdims=True)
        e = jnp.exp(blk - m)
        s = jnp.sum(jnp.sum(e, axis=1, keepdims=True), axis=0, keepdims=True)
        dist_ref[b] = e * pl.reciprocal(s, approx=True)          # (T, A) probs

    v_ref[...] = head[:, A:A + 1]                                # (B*T, 1), reshaped outside
    hout_ref[...] = h
    cout_ref[...] = c


def actor_critic_pfn(x, h0, c0, params):
    """x: (B, T, IN) f32;  h0, c0: (1, B, H) f32 (PyTorch LSTM hidden-state layout)."""
    B, T, _ = x.shape
    A, H = ACTION_SIZE, HIDDEN
    bf16 = jnp.bfloat16

    # time-major flatten so each timestep's rows are a contiguous slice in-kernel
    x_tm = jnp.transpose(x, (1, 0, 2)).reshape(T * B, IN_DIM)
    # fuse actor + value heads into a single (H, A+1) weight / bias
    w_head = jnp.concatenate([params["wa"], params["wv"]], axis=1)
    b_head = jnp.concatenate([params["ba"], params["bv"]], axis=1)

    inputs = (x_tm, h0[0], c0[0],
              params["w1"].astype(bf16), params["b1"],
              params["wih"].astype(bf16), params["whh"].astype(bf16), params["bl"],
              w_head.astype(bf16), b_head)

    out_shapes = (
        jax.ShapeDtypeStruct((B, T, A), jnp.float32),     # per-step action probs
        jax.ShapeDtypeStruct((B * T, 1), jnp.float32),    # per-step values (batch-major)
        jax.ShapeDtypeStruct((B, H), jnp.float32),        # h_out (squeezed)
        jax.ShapeDtypeStruct((B, H), jnp.float32),        # c_out (squeezed)
    )
    vmem = pl.BlockSpec(memory_space=pltpu.MemorySpace.VMEM)
    # Note: grid=() — whole kernel on one TC; footprint < 1 MiB so no tiling needed.
    # For a large production batch, shard a batch grid with dimension_semantics=("parallel",).
    dist3, v2, h_out, c_out = pl.pallas_call(
        actor_critic_kernel,
        out_shape=out_shapes,
        in_specs=[vmem] * len(inputs),
        out_specs=tuple([vmem] * len(out_shapes)),
        scratch_shapes=[pltpu.VMEM((B, T, H), jnp.float32)],
    )(*inputs)

    dist = dist3.reshape(B, T * A)     # == softmax(a(rnn_out).view(B, -1), dim=-1)
    v_out = v2.reshape(B, T)           # == v(rnn_out).view(B, -1)
    # restore PyTorch (num_layers=1, B, H) convention for hidden states
    return dist, v_out, h_out[None], c_out[None]


def init_params(key):
    """Deterministic synthetic parameters with the module's shapes (pre-transposed)."""
    ks = jax.random.split(key, 10)

    def lin_w(k, fan_in, fan_out):
        return (jax.random.normal(k, (fan_in, fan_out), jnp.float32)
                / jnp.sqrt(jnp.float32(fan_in)))

    w1 = lin_w(ks[0], IN_DIM, HIDDEN)                       # fc1.weight.T
    b1 = 0.01 * jax.random.normal(ks[1], (1, HIDDEN), jnp.float32)
    wih = lin_w(ks[2], HIDDEN, 4 * HIDDEN)                  # lstm.weight_ih_l0.T
    whh = lin_w(ks[3], HIDDEN, 4 * HIDDEN)                  # lstm.weight_hh_l0.T
    b_ih = 0.01 * jax.random.normal(ks[4], (1, 4 * HIDDEN), jnp.float32)
    b_hh = 0.01 * jax.random.normal(ks[5], (1, 4 * HIDDEN), jnp.float32)
    wa = lin_w(ks[6], HIDDEN, ACTION_SIZE)                  # a.weight.T
    ba = 0.01 * jax.random.normal(ks[7], (1, ACTION_SIZE), jnp.float32)
    wv = lin_w(ks[8], HIDDEN, 1)                            # v.weight.T
    bv = 0.01 * jax.random.normal(ks[9], (1, 1), jnp.float32)
    return dict(w1=w1, b1=b1, wih=wih, whh=whh, bl=b_ih + b_hh,
                wa=wa, ba=ba, wv=wv, bv=bv)


def reference_forward(x, h0, c0, p):
    """Pure-JAX f32 reference mirroring the PyTorch module exactly."""
    B, T, _ = x.shape
    h, c = h0[0], c0[0]
    rs = []
    for t in range(T):
        z = jax.nn.relu(x[:, t, :] @ p["w1"] + p["b1"])
        gates = z @ p["wih"] + h @ p["whh"] + p["bl"]
        i_g, f_g, g_g, o_g = jnp.split(gates, 4, axis=-1)
        i_g = jax.nn.sigmoid(i_g); f_g = jax.nn.sigmoid(f_g)
        g_g = jnp.tanh(g_g); o_g = jax.nn.sigmoid(o_g)
        c = f_g * c + i_g * g_g
        h = o_g * jnp.tanh(c)
        rs.append(jax.nn.relu(h))
    r = jnp.stack(rs, axis=1)                               # (B, T, H)
    a = (r @ p["wa"] + p["ba"]).reshape(B, -1)              # (B, T*A)
    dist = jax.nn.softmax(a, axis=-1)
    v = (r @ p["wv"] + p["bv"]).reshape(B, -1)              # (B, T)
    return dist, v, h[None], c[None]


if __name__ == "__main__":
    key = jax.random.PRNGKey(0)
    k_x, k_h, k_c, k_p = jax.random.split(key, 4)

    x = jax.random.normal(k_x, (BATCH, SEQ, IN_DIM), jnp.float32)
    h0 = jax.random.normal(k_h, (1, BATCH, HIDDEN), jnp.float32) * 0.1
    c0 = jax.random.normal(k_c, (1, BATCH, HIDDEN), jnp.float32) * 0.1
    params = init_params(k_p)

    dist, v_out, h_out, c_out = jax.jit(actor_critic_pfn)(x, h0, c0, params)
    jax.block_until_ready((dist, v_out, h_out, c_out))

    # sanity check against the pure-f32 reference.
    # tolerance is loosened vs. the f32-only kernel because MXU operands are bf16
    # (f32 accumulation); observed error is well under this bound.
    r_dist, r_v, r_h, r_c = reference_forward(x, h0, c0, params)
    assert dist.shape == (BATCH, SEQ * ACTION_SIZE)
    assert v_out.shape == (BATCH, SEQ)
    assert h_out.shape == (1, BATCH, HIDDEN) and c_out.shape == (1, BATCH, HIDDEN)
    TOL = dict(atol=2e-2, rtol=2e-2)
    assert jnp.allclose(dist, r_dist, **TOL)
    assert jnp.allclose(v_out, r_v, **TOL)
    assert jnp.allclose(h_out, r_h, **TOL)
    assert jnp.allclose(c_out, r_c, **TOL)

    print("KERNEL_OK")
</pallas_src>

<mosaic_0001>
module attributes {stable_mosaic.version = 11 : i64} {
  func.func @actor_critic_kernel(%arg0: memref<16x16xf32, #tpu.memory_space<vmem>>, %arg1: memref<2x128xf32, #tpu.memory_space<vmem>>, %arg2: memref<2x128xf32, #tpu.memory_space<vmem>>, %arg3: memref<16x128xbf16, #tpu.memory_space<vmem>>, %arg4: memref<1x128xf32, #tpu.memory_space<vmem>>, %arg5: memref<128x512xbf16, #tpu.memory_space<vmem>>, %arg6: memref<128x512xbf16, #tpu.memory_space<vmem>>, %arg7: memref<1x512xf32, #tpu.memory_space<vmem>>, %arg8: memref<128x5xbf16, #tpu.memory_space<vmem>>, %arg9: memref<1x5xf32, #tpu.memory_space<vmem>>, %arg10: memref<2x8x4xf32, #tpu.memory_space<vmem>>, %arg11: memref<16x1xf32, #tpu.memory_space<vmem>>, %arg12: memref<2x128xf32, #tpu.memory_space<vmem>>, %arg13: memref<2x128xf32, #tpu.memory_space<vmem>>, %arg14: memref<2x8x128xf32, #tpu.memory_space<vmem>>) attributes {dimension_semantics = [], scalar_prefetch = 0 : i64, scratch_operands = 1 : i64, tpu.core_type = #tpu.core_type<tc>} {
    %c0 = arith.constant 0 : index
    %c0_0 = arith.constant 0 : index
    %0 = vector.load %arg0[%c0, %c0_0] : memref<16x16xf32, #tpu.memory_space<vmem>>, vector<16x16xf32>
    %1 = arith.truncf %0 : vector<16x16xf32> to vector<16x16xbf16>
    %c0_1 = arith.constant 0 : index
    %c0_2 = arith.constant 0 : index
    %2 = vector.load %arg3[%c0_1, %c0_2] : memref<16x128xbf16, #tpu.memory_space<vmem>>, vector<16x128xbf16>
    %cst = arith.constant dense<0.000000e+00> : vector<16x128xf32>
    %3 = tpu.matmul %1, %2, %cst {dimension_numbers = #tpu.dot_dimension_numbers<[1], [0], [0], [1], [0, 0, 1, 1], [], []>} : vector<16x16xbf16>, vector<16x128xbf16>, vector<16x128xf32> -> vector<16x128xf32>
    %c0_3 = arith.constant 0 : index
    %c0_4 = arith.constant 0 : index
    %4 = vector.load %arg4[%c0_3, %c0_4] : memref<1x128xf32, #tpu.memory_space<vmem>>, vector<1x128xf32>
    %5 = vector.broadcast %4 : vector<1x128xf32> to vector<16x128xf32>
    %6 = arith.addf %3, %5 : vector<16x128xf32>
    %cst_5 = arith.constant 0.000000e+00 : f32
    %7 = vector.broadcast %cst_5 : f32 to vector<16x128xf32>
    %8 = arith.maximumf %6, %7 : vector<16x128xf32>
    %9 = arith.truncf %8 : vector<16x128xf32> to vector<16x128xbf16>
    %c0_6 = arith.constant 0 : index
    %c0_7 = arith.constant 0 : index
    %10 = vector.load %arg5[%c0_6, %c0_7] : memref<128x512xbf16, #tpu.memory_space<vmem>>, vector<128x512xbf16>
    %cst_8 = arith.constant dense<0.000000e+00> : vector<16x512xf32>
    %11 = tpu.matmul %9, %10, %cst_8 {dimension_numbers = #tpu.dot_dimension_numbers<[1], [0], [0], [1], [0, 0, 1, 1], [], []>} : vector<16x128xbf16>, vector<128x512xbf16>, vector<16x512xf32> -> vector<16x512xf32>
    %c0_9 = arith.constant 0 : index
    %c0_10 = arith.constant 0 : index
    %12 = vector.load %arg7[%c0_9, %c0_10] : memref<1x512xf32, #tpu.memory_space<vmem>>, vector<1x512xf32>
    %13 = vector.broadcast %12 : vector<1x512xf32> to vector<16x512xf32>
    %14 = arith.addf %11, %13 : vector<16x512xf32>
    %c0_11 = arith.constant 0 : index
    %c0_12 = arith.constant 0 : index
    %15 = vector.load %arg6[%c0_11, %c0_12] : memref<128x512xbf16, #tpu.memory_space<vmem>>, vector<128x512xbf16>
    %c0_13 = arith.constant 0 : index
    %c0_14 = arith.constant 0 : index
    %16 = vector.load %arg1[%c0_13, %c0_14] : memref<2x128xf32, #tpu.memory_space<vmem>>, vector<2x128xf32>
    %c0_15 = arith.constant 0 : index
    %c0_16 = arith.constant 0 : index
    %17 = vector.load %arg2[%c0_15, %c0_16] : memref<2x128xf32, #tpu.memory_space<vmem>>, vector<2x128xf32>
    %18 = vector.extract_strided_slice %14 {offsets = [0, 0], sizes = [2, 512], strides = [1, 1]} : vector<16x512xf32> to vector<2x512xf32>
    %19 = arith.truncf %16 : vector<2x128xf32> to vector<2x128xbf16>
    %cst_17 = arith.constant dense<0.000000e+00> : vector<2x512xf32>
    %20 = tpu.matmul %19, %15, %cst_17 {dimension_numbers = #tpu.dot_dimension_numbers<[1], [0], [0], [1], [0, 0, 1, 1], [], []>} : vector<2x128xbf16>, vector<128x512xbf16>, vector<2x512xf32> -> vector<2x512xf32>
    %21 = arith.addf %18, %20 : vector<2x512xf32>
    %22 = vector.extract_strided_slice %21 {offsets = [0, 0], sizes = [2, 128], strides = [1, 1]} : vector<2x512xf32> to vector<2x128xf32>
    %23 = arith.negf %22 : vector<2x128xf32>
    %24 = math.exp %23 : vector<2x128xf32>
    %cst_18 = arith.constant 1.000000e+00 : f32
    %25 = vector.broadcast %cst_18 : f32 to vector<2x128xf32>
    %26 = arith.addf %25, %24 : vector<2x128xf32>
    %27 = arith.divf %25, %26 : vector<2x128xf32>
    %28 = vector.extract_strided_slice %21 {offsets = [0, 128], sizes = [2, 128], strides = [1, 1]} : vector<2x512xf32> to vector<2x128xf32>
    %29 = arith.negf %28 : vector<2x128xf32>
    %30 = math.exp %29 : vector<2x128xf32>
    %cst_19 = arith.constant 1.000000e+00 : f32
    %31 = vector.broadcast %cst_19 : f32 to vector<2x128xf32>
    %32 = arith.addf %31, %30 : vector<2x128xf32>
    %33 = arith.divf %31, %32 : vector<2x128xf32>
    %34 = vector.extract_strided_slice %21 {offsets = [0, 256], sizes = [2, 128], strides = [1, 1]} : vector<2x512xf32> to vector<2x128xf32>
    %35 = math.tanh %34 : vector<2x128xf32>
    %36 = vector.extract_strided_slice %21 {offsets = [0, 384], sizes = [2, 128], strides = [1, 1]} : vector<2x512xf32> to vector<2x128xf32>
    %37 = arith.negf %36 : vector<2x128xf32>
    %38 = math.exp %37 : vector<2x128xf32>
    %cst_20 = arith.constant 1.000000e+00 : f32
    %39 = vector.broadcast %cst_20 : f32 to vector<2x128xf32>
    %40 = arith.addf %39, %38 : vector<2x128xf32>
    %41 = arith.divf %39, %40 : vector<2x128xf32>
    %42 = arith.mulf %33, %17 : vector<2x128xf32>
    %43 = arith.mulf %27, %35 : vector<2x128xf32>
    %44 = arith.addf %42, %43 : vector<2x128xf32>
    %45 = math.tanh %44 : vector<2x128xf32>
    %46 = arith.mulf %41, %45 : vector<2x128xf32>
    %cst_21 = arith.constant 0.000000e+00 : f32
    %47 = vector.broadcast %cst_21 : f32 to vector<2x128xf32>
    %48 = arith.maximumf %46, %47 : vector<2x128xf32>
    %49 = vector.shape_cast %48 : vector<2x128xf32> to vector<2x1x128xf32>
    %c0_22 = arith.constant 0 : index
    %c0_23 = arith.constant 0 : index
    %c0_24 = arith.constant 0 : index
    %50 = vector.load %arg14[%c0_22, %c0_23, %c0_24] : memref<2x8x128xf32, #tpu.memory_space<vmem>>, vector<2x1x128xf32>
    tpu.vector_store %arg14[%c0_22, %c0_23, %c0_24], %49 {strides = array<i32>} : memref<2x8x128xf32, #tpu.memory_space<vmem>>, vector<2x1x128xf32>,
    %51 = vector.extract_strided_slice %14 {offsets = [2, 0], sizes = [2, 512], strides = [1, 1]} : vector<16x512xf32> to vector<2x512xf32>
    %52 = arith.truncf %46 : vector<2x128xf32> to vector<2x128xbf16>
    %cst_25 = arith.constant dense<0.000000e+00> : vector<2x512xf32>
    %53 = tpu.matmul %52, %15, %cst_25 {dimension_numbers = #tpu.dot_dimension_numbers<[1], [0], [0], [1], [0, 0, 1, 1], [], []>} : vector<2x128xbf16>, vector<128x512xbf16>, vector<2x512xf32> -> vector<2x512xf32>
    %54 = arith.addf %51, %53 : vector<2x512xf32>
    %55 = vector.extract_strided_slice %54 {offsets = [0, 0], sizes = [2, 128], strides = [1, 1]} : vector<2x512xf32> to vector<2x128xf32>
    %56 = arith.negf %55 : vector<2x128xf32>
    %57 = math.exp %56 : vector<2x128xf32>
    %cst_26 = arith.constant 1.000000e+00 : f32
    %58 = vector.broadcast %cst_26 : f32 to vector<2x128xf32>
    %59 = arith.addf %58, %57 : vector<2x128xf32>
    %60 = arith.divf %58, %59 : vector<2x128xf32>
    %61 = vector.extract_strided_slice %54 {offsets = [0, 128], sizes = [2, 128], strides = [1, 1]} : vector<2x512xf32> to vector<2x128xf32>
    %62 = arith.negf %61 : vector<2x128xf32>
    %63 = math.exp %62 : vector<2x128xf32>
    %cst_27 = arith.constant 1.000000e+00 : f32
    %64 = vector.broadcast %cst_27 : f32 to vector<2x128xf32>
    %65 = arith.addf %64, %63 : vector<2x128xf32>
    %66 = arith.divf %64, %65 : vector<2x128xf32>
    %67 = vector.extract_strided_slice %54 {offsets = [0, 256], sizes = [2, 128], strides = [1, 1]} : vector<2x512xf32> to vector<2x128xf32>
    %68 = math.tanh %67 : vector<2x128xf32>
    %69 = vector.extract_strided_slice %54 {offsets = [0, 384], sizes = [2, 128], strides = [1, 1]} : vector<2x512xf32> to vector<2x128xf32>
    %70 = arith.negf %69 : vector<2x128xf32>
    %71 = math.exp %70 : vector<2x128xf32>
    %cst_28 = arith.constant 1.000000e+00 : f32
    %72 = vector.broadcast %cst_28 : f32 to vector<2x128xf32>
    %73 = arith.addf %72, %71 : vector<2x128xf32>
    %74 = arith.divf %72, %73 : vector<2x128xf32>
    %75 = arith.mulf %66, %44 : vector<2x128xf32>
    %76 = arith.mulf %60, %68 : vector<2x128xf32>
    %77 = arith.addf %75, %76 : vector<2x128xf32>
    %78 = math.tanh %77 : vector<2x128xf32>
    %79 = arith.mulf %74, %78 : vector<2x128xf32>
    %cst_29 = arith.constant 0.000000e+00 : f32
    %80 = vector.broadcast %cst_29 : f32 to vector<2x128xf32>
    %81 = arith.maximumf %79, %80 : vector<2x128xf32>
    %82 = vector.shape_cast %81 : vector<2x128xf32> to vector<2x1x128xf32>
    %c0_30 = arith.constant 0 : index
    %c1 = arith.constant 1 : index
    %c0_31 = arith.constant 0 : index
    %83 = vector.load %arg14[%c0_30, %c1, %c0_31] : memref<2x8x128xf32, #tpu.memory_space<vmem>>, vector<2x1x128xf32>
    tpu.vector_store %arg14[%c0_30, %c1, %c0_31], %82 {strides = array<i32>} : memref<2x8x128xf32, #tpu.memory_space<vmem>>, vector<2x1x128xf32>,
    %84 = vector.extract_strided_slice %14 {offsets = [4, 0], sizes = [2, 512], strides = [1, 1]} : vector<16x512xf32> to vector<2x512xf32>
    %85 = arith.truncf %79 : vector<2x128xf32> to vector<2x128xbf16>
    %cst_32 = arith.constant dense<0.000000e+00> : vector<2x512xf32>
    %86 = tpu.matmul %85, %15, %cst_32 {dimension_numbers = #tpu.dot_dimension_numbers<[1], [0], [0], [1], [0, 0, 1, 1], [], []>} : vector<2x128xbf16>, vector<128x512xbf16>, vector<2x512xf32> -> vector<2x512xf32>
    %87 = arith.addf %84, %86 : vector<2x512xf32>
    %88 = vector.extract_strided_slice %87 {offsets = [0, 0], sizes = [2, 128], strides = [1, 1]} : vector<2x512xf32> to vector<2x128xf32>
    %89 = arith.negf %88 : vector<2x128xf32>
    %90 = math.exp %89 : vector<2x128xf32>
    %cst_33 = arith.constant 1.000000e+00 : f32
    %91 = vector.broadcast %cst_33 : f32 to vector<2x128xf32>
    %92 = arith.addf %91, %90 : vector<2x128xf32>
    %93 = arith.divf %91, %92 : vector<2x128xf32>
    %94 = vector.extract_strided_slice %87 {offsets = [0, 128], sizes = [2, 128], strides = [1, 1]} : vector<2x512xf32> to vector<2x128xf32>
    %95 = arith.negf %94 : vector<2x128xf32>
    %96 = math.exp %95 : vector<2x128xf32>
    %cst_34 = arith.constant 1.000000e+00 : f32
    %97 = vector.broadcast %cst_34 : f32 to vector<2x128xf32>
    %98 = arith.addf %97, %96 : vector<2x128xf32>
    %99 = arith.divf %97, %98 : vector<2x128xf32>
    %100 = vector.extract_strided_slice %87 {offsets = [0, 256], sizes = [2, 128], strides = [1, 1]} : vector<2x512xf32> to vector<2x128xf32>
    %101 = math.tanh %100 : vector<2x128xf32>
    %102 = vector.extract_strided_slice %87 {offsets = [0, 384], sizes = [2, 128], strides = [1, 1]} : vector<2x512xf32> to vector<2x128xf32>
    %103 = arith.negf %102 : vector<2x128xf32>
    %104 = math.exp %103 : vector<2x128xf32>
    %cst_35 = arith.constant 1.000000e+00 : f32
    %105 = vector.broadcast %cst_35 : f32 to vector<2x128xf32>
    %106 = arith.addf %105, %104 : vector<2x128xf32>
    %107 = arith.divf %105, %106 : vector<2x128xf32>
    %108 = arith.mulf %99, %77 : vector<2x128xf32>
    %109 = arith.mulf %93, %101 : vector<2x128xf32>
    %110 = arith.addf %108, %109 : vector<2x128xf32>
    %111 = math.tanh %110 : vector<2x128xf32>
    %112 = arith.mulf %107, %111 : vector<2x128xf32>
    %cst_36 = arith.constant 0.000000e+00 : f32
    %113 = vector.broadcast %cst_36 : f32 to vector<2x128xf32>
    %114 = arith.maximumf %112, %113 : vector<2x128xf32>
    %115 = vector.shape_cast %114 : vector<2x128xf32> to vector<2x1x128xf32>
    %c0_37 = arith.constant 0 : index
    %c2 = arith.constant 2 : index
    %c0_38 = arith.constant 0 : index
    %116 = vector.load %arg14[%c0_37, %c2, %c0_38] : memref<2x8x128xf32, #tpu.memory_space<vmem>>, vector<2x1x128xf32>
    tpu.vector_store %arg14[%c0_37, %c2, %c0_38], %115 {strides = array<i32>} : memref<2x8x128xf32, #tpu.memory_space<vmem>>, vector<2x1x128xf32>,
    %117 = vector.extract_strided_slice %14 {offsets = [6, 0], sizes = [2, 512], strides = [1, 1]} : vector<16x512xf32> to vector<2x512xf32>
    %118 = arith.truncf %112 : vector<2x128xf32> to vector<2x128xbf16>
    %cst_39 = arith.constant dense<0.000000e+00> : vector<2x512xf32>
    %119 = tpu.matmul %118, %15, %cst_39 {dimension_numbers = #tpu.dot_dimension_numbers<[1], [0], [0], [1], [0, 0, 1, 1], [], []>} : vector<2x128xbf16>, vector<128x512xbf16>, vector<2x512xf32> -> vector<2x512xf32>
    %120 = arith.addf %117, %119 : vector<2x512xf32>
    %121 = vector.extract_strided_slice %120 {offsets = [0, 0], sizes = [2, 128], strides = [1, 1]} : vector<2x512xf32> to vector<2x128xf32>
    %122 = arith.negf %121 : vector<2x128xf32>
    %123 = math.exp %122 : vector<2x128xf32>
    %cst_40 = arith.constant 1.000000e+00 : f32
    %124 = vector.broadcast %cst_40 : f32 to vector<2x128xf32>
    %125 = arith.addf %124, %123 : vector<2x128xf32>
    %126 = arith.divf %124, %125 : vector<2x128xf32>
    %127 = vector.extract_strided_slice %120 {offsets = [0, 128], sizes = [2, 128], strides = [1, 1]} : vector<2x512xf32> to vector<2x128xf32>
    %128 = arith.negf %127 : vector<2x128xf32>
    %129 = math.exp %128 : vector<2x128xf32>
    %cst_41 = arith.constant 1.000000e+00 : f32
    %130 = vector.broadcast %cst_41 : f32 to vector<2x128xf32>
    %131 = arith.addf %130, %129 : vector<2x128xf32>
    %132 = arith.divf %130, %131 : vector<2x128xf32>
    %133 = vector.extract_strided_slice %120 {offsets = [0, 256], sizes = [2, 128], strides = [1, 1]} : vector<2x512xf32> to vector<2x128xf32>
    %134 = math.tanh %133 : vector<2x128xf32>
    %135 = vector.extract_strided_slice %120 {offsets = [0, 384], sizes = [2, 128], strides = [1, 1]} : vector<2x512xf32> to vector<2x128xf32>
    %136 = arith.negf %135 : vector<2x128xf32>
    %137 = math.exp %136 : vector<2x128xf32>
    %cst_42 = arith.constant 1.000000e+00 : f32
    %138 = vector.broadcast %cst_42 : f32 to vector<2x128xf32>
    %139 = arith.addf %138, %137 : vector<2x128xf32>
    %140 = arith.divf %138, %139 : vector<2x128xf32>
    %141 = arith.mulf %132, %110 : vector<2x128xf32>
    %142 = arith.mulf %126, %134 : vector<2x128xf32>
    %143 = arith.addf %141, %142 : vector<2x128xf32>
    %144 = math.tanh %143 : vector<2x128xf32>
    %145 = arith.mulf %140, %144 : vector<2x128xf32>
    %cst_43 = arith.constant 0.000000e+00 : f32
    %146 = vector.broadcast %cst_43 : f32 to vector<2x128xf32>
    %147 = arith.maximumf %145, %146 : vector<2x128xf32>
    %148 = vector.shape_cast %147 : vector<2x128xf32> to vector<2x1x128xf32>
    %c0_44 = arith.constant 0 : index
    %c3 = arith.constant 3 : index
    %c0_45 = arith.constant 0 : index
    %149 = vector.load %arg14[%c0_44, %c3, %c0_45] : memref<2x8x128xf32, #tpu.memory_space<vmem>>, vector<2x1x128xf32>
    tpu.vector_store %arg14[%c0_44, %c3, %c0_45], %148 {strides = array<i32>} : memref<2x8x128xf32, #tpu.memory_space<vmem>>, vector<2x1x128xf32>,
    %150 = vector.extract_strided_slice %14 {offsets = [8, 0], sizes = [2, 512], strides = [1, 1]} : vector<16x512xf32> to vector<2x512xf32>
    %151 = arith.truncf %145 : vector<2x128xf32> to vector<2x128xbf16>
    %cst_46 = arith.constant dense<0.000000e+00> : vector<2x512xf32>
    %152 = tpu.matmul %151, %15, %cst_46 {dimension_numbers = #tpu.dot_dimension_numbers<[1], [0], [0], [1], [0, 0, 1, 1], [], []>} : vector<2x128xbf16>, vector<128x512xbf16>, vector<2x512xf32> -> vector<2x512xf32>
    %153 = arith.addf %150, %152 : vector<2x512xf32>
    %154 = vector.extract_strided_slice %153 {offsets = [0, 0], sizes = [2, 128], strides = [1, 1]} : vector<2x512xf32> to vector<2x128xf32>
    %155 = arith.negf %154 : vector<2x128xf32>
    %156 = math.exp %155 : vector<2x128xf32>
    %cst_47 = arith.constant 1.000000e+00 : f32
    %157 = vector.broadcast %cst_47 : f32 to vector<2x128xf32>
    %158 = arith.addf %157, %156 : vector<2x128xf32>
    %159 = arith.divf %157, %158 : vector<2x128xf32>
    %160 = vector.extract_strided_slice %153 {offsets = [0, 128], sizes = [2, 128], strides = [1, 1]} : vector<2x512xf32> to vector<2x128xf32>
    %161 = arith.negf %160 : vector<2x128xf32>
    %162 = math.exp %161 : vector<2x128xf32>
    %cst_48 = arith.constant 1.000000e+00 : f32
    %163 = vector.broadcast %cst_48 : f32 to vector<2x128xf32>
    %164 = arith.addf %163, %162 : vector<2x128xf32>
    %165 = arith.divf %163, %164 : vector<2x128xf32>
    %166 = vector.extract_strided_slice %153 {offsets = [0, 256], sizes = [2, 128], strides = [1, 1]} : vector<2x512xf32> to vector<2x128xf32>
    %167 = math.tanh %166 : vector<2x128xf32>
    %168 = vector.extract_strided_slice %153 {offsets = [0, 384], sizes = [2, 128], strides = [1, 1]} : vector<2x512xf32> to vector<2x128xf32>
    %169 = arith.negf %168 : vector<2x128xf32>
    %170 = math.exp %169 : vector<2x128xf32>
    %cst_49 = arith.constant 1.000000e+00 : f32
    %171 = vector.broadcast %cst_49 : f32 to vector<2x128xf32>
    %172 = arith.addf %171, %170 : vector<2x128xf32>
    %173 = arith.divf %171, %172 : vector<2x128xf32>
    %174 = arith.mulf %165, %143 : vector<2x128xf32>
    %175 = arith.mulf %159, %167 : vector<2x128xf32>
    %176 = arith.addf %174, %175 : vector<2x128xf32>
    %177 = math.tanh %176 : vector<2x128xf32>
    %178 = arith.mulf %173, %177 : vector<2x128xf32>
    %cst_50 = arith.constant 0.000000e+00 : f32
    %179 = vector.broadcast %cst_50 : f32 to vector<2x128xf32>
    %180 = arith.maximumf %178, %179 : vector<2x128xf32>
    %181 = vector.shape_cast %180 : vector<2x128xf32> to vector<2x1x128xf32>
    %c0_51 = arith.constant 0 : index
    %c4 = arith.constant 4 : index
    %c0_52 = arith.constant 0 : index
    %182 = vector.load %arg14[%c0_51, %c4, %c0_52] : memref<2x8x128xf32, #tpu.memory_space<vmem>>, vector<2x1x128xf32>
    tpu.vector_store %arg14[%c0_51, %c4, %c0_52], %181 {strides = array<i32>} : memref<2x8x128xf32, #tpu.memory_space<vmem>>, vector<2x1x128xf32>,
    %183 = vector.extract_strided_slice %14 {offsets = [10, 0], sizes = [2, 512], strides = [1, 1]} : vector<16x512xf32> to vector<2x512xf32>
    %184 = arith.truncf %178 : vector<2x128xf32> to vector<2x128xbf16>
    %cst_53 = arith.constant dense<0.000000e+00> : vector<2x512xf32>
    %185 = tpu.matmul %184, %15, %cst_53 {dimension_numbers = #tpu.dot_dimension_numbers<[1], [0], [0], [1], [0, 0, 1, 1], [], []>} : vector<2x128xbf16>, vector<128x512xbf16>, vector<2x512xf32> -> vector<2x512xf32>
    %186 = arith.addf %183, %185 : vector<2x512xf32>
    %187 = vector.extract_strided_slice %186 {offsets = [0, 0], sizes = [2, 128], strides = [1, 1]} : vector<2x512xf32> to vector<2x128xf32>
    %188 = arith.negf %187 : vector<2x128xf32>
    %189 = math.exp %188 : vector<2x128xf32>
    %cst_54 = arith.constant 1.000000e+00 : f32
    %190 = vector.broadcast %cst_54 : f32 to vector<2x128xf32>
    %191 = arith.addf %190, %189 : vector<2x128xf32>
    %192 = arith.divf %190, %191 : vector<2x128xf32>
    %193 = vector.extract_strided_slice %186 {offsets = [0, 128], sizes = [2, 128], strides = [1, 1]} : vector<2x512xf32> to vector<2x128xf32>
    %194 = arith.negf %193 : vector<2x128xf32>
    %195 = math.exp %194 : vector<2x128xf32>
    %cst_55 = arith.constant 1.000000e+00 : f32
    %196 = vector.broadcast %cst_55 : f32 to vector<2x128xf32>
    %197 = arith.addf %196, %195 : vector<2x128xf32>
    %198 = arith.divf %196, %197 : vector<2x128xf32>
    %199 = vector.extract_strided_slice %186 {offsets = [0, 256], sizes = [2, 128], strides = [1, 1]} : vector<2x512xf32> to vector<2x128xf32>
    %200 = math.tanh %199 : vector<2x128xf32>
    %201 = vector.extract_strided_slice %186 {offsets = [0, 384], sizes = [2, 128], strides = [1, 1]} : vector<2x512xf32> to vector<2x128xf32>
    %202 = arith.negf %201 : vector<2x128xf32>
    %203 = math.exp %202 : vector<2x128xf32>
    %cst_56 = arith.constant 1.000000e+00 : f32
    %204 = vector.broadcast %cst_56 : f32 to vector<2x128xf32>
    %205 = arith.addf %204, %203 : vector<2x128xf32>
    %206 = arith.divf %204, %205 : vector<2x128xf32>
    %207 = arith.mulf %198, %176 : vector<2x128xf32>
    %208 = arith.mulf %192, %200 : vector<2x128xf32>
    %209 = arith.addf %207, %208 : vector<2x128xf32>
    %210 = math.tanh %209 : vector<2x128xf32>
    %211 = arith.mulf %206, %210 : vector<2x128xf32>
    %cst_57 = arith.constant 0.000000e+00 : f32
    %212 = vector.broadcast %cst_57 : f32 to vector<2x128xf32>
    %213 = arith.maximumf %211, %212 : vector<2x128xf32>
    %214 = vector.shape_cast %213 : vector<2x128xf32> to vector<2x1x128xf32>
    %c0_58 = arith.constant 0 : index
    %c5 = arith.constant 5 : index
    %c0_59 = arith.constant 0 : index
    %215 = vector.load %arg14[%c0_58, %c5, %c0_59] : memref<2x8x128xf32, #tpu.memory_space<vmem>>, vector<2x1x128xf32>
    tpu.vector_store %arg14[%c0_58, %c5, %c0_59], %214 {strides = array<i32>} : memref<2x8x128xf32, #tpu.memory_space<vmem>>, vector<2x1x128xf32>,
    %216 = vector.extract_strided_slice %14 {offsets = [12, 0], sizes = [2, 512], strides = [1, 1]} : vector<16x512xf32> to vector<2x512xf32>
    %217 = arith.truncf %211 : vector<2x128xf32> to vector<2x128xbf16>
    %cst_60 = arith.constant dense<0.000000e+00> : vector<2x512xf32>
    %218 = tpu.matmul %217, %15, %cst_60 {dimension_numbers = #tpu.dot_dimension_numbers<[1], [0], [0], [1], [0, 0, 1, 1], [], []>} : vector<2x128xbf16>, vector<128x512xbf16>, vector<2x512xf32> -> vector<2x512xf32>
    %219 = arith.addf %216, %218 : vector<2x512xf32>
    %220 = vector.extract_strided_slice %219 {offsets = [0, 0], sizes = [2, 128], strides = [1, 1]} : vector<2x512xf32> to vector<2x128xf32>
    %221 = arith.negf %220 : vector<2x128xf32>
    %222 = math.exp %221 : vector<2x128xf32>
    %cst_61 = arith.constant 1.000000e+00 : f32
    %223 = vector.broadcast %cst_61 : f32 to vector<2x128xf32>
    %224 = arith.addf %223, %222 : vector<2x128xf32>
    %225 = arith.divf %223, %224 : vector<2x128xf32>
    %226 = vector.extract_strided_slice %219 {offsets = [0, 128], sizes = [2, 128], strides = [1, 1]} : vector<2x512xf32> to vector<2x128xf32>
    %227 = arith.negf %226 : vector<2x128xf32>
    %228 = math.exp %227 : vector<2x128xf32>
    %cst_62 = arith.constant 1.000000e+00 : f32
    %229 = vector.broadcast %cst_62 : f32 to vector<2x128xf32>
    %230 = arith.addf %229, %228 : vector<2x128xf32>
    %231 = arith.divf %229, %230 : vector<2x128xf32>
    %232 = vector.extract_strided_slice %219 {offsets = [0, 256], sizes = [2, 128], strides = [1, 1]} : vector<2x512xf32> to vector<2x128xf32>
    %233 = math.tanh %232 : vector<2x128xf32>
    %234 = vector.extract_strided_slice %219 {offsets = [0, 384], sizes = [2, 128], strides = [1, 1]} : vector<2x512xf32> to vector<2x128xf32>
    %235 = arith.negf %234 : vector<2x128xf32>
    %236 = math.exp %235 : vector<2x128xf32>
    %cst_63 = arith.constant 1.000000e+00 : f32
    %237 = vector.broadcast %cst_63 : f32 to vector<2x128xf32>
    %238 = arith.addf %237, %236 : vector<2x128xf32>
    %239 = arith.divf %237, %238 : vector<2x128xf32>
    %240 = arith.mulf %231, %209 : vector<2x128xf32>
    %241 = arith.mulf %225, %233 : vector<2x128xf32>
    %242 = arith.addf %240, %241 : vector<2x128xf32>
    %243 = math.tanh %242 : vector<2x128xf32>
    %244 = arith.mulf %239, %243 : vector<2x128xf32>
    %cst_64 = arith.constant 0.000000e+00 : f32
    %245 = vector.broadcast %cst_64 : f32 to vector<2x128xf32>
    %246 = arith.maximumf %244, %245 : vector<2x128xf32>
    %247 = vector.shape_cast %246 : vector<2x128xf32> to vector<2x1x128xf32>
    %c0_65 = arith.constant 0 : index
    %c6 = arith.constant 6 : index
    %c0_66 = arith.constant 0 : index
    %248 = vector.load %arg14[%c0_65, %c6, %c0_66] : memref<2x8x128xf32, #tpu.memory_space<vmem>>, vector<2x1x128xf32>
    tpu.vector_store %arg14[%c0_65, %c6, %c0_66], %247 {strides = array<i32>} : memref<2x8x128xf32, #tpu.memory_space<vmem>>, vector<2x1x128xf32>,
    %249 = vector.extract_strided_slice %14 {offsets = [14, 0], sizes = [2, 512], strides = [1, 1]} : vector<16x512xf32> to vector<2x512xf32>
    %250 = arith.truncf %244 : vector<2x128xf32> to vector<2x128xbf16>
    %cst_67 = arith.constant dense<0.000000e+00> : vector<2x512xf32>
    %251 = tpu.matmul %250, %15, %cst_67 {dimension_numbers = #tpu.dot_dimension_numbers<[1], [0], [0], [1], [0, 0, 1, 1], [], []>} : vector<2x128xbf16>, vector<128x512xbf16>, vector<2x512xf32> -> vector<2x512xf32>
    %252 = arith.addf %249, %251 : vector<2x512xf32>
    %253 = vector.extract_strided_slice %252 {offsets = [0, 0], sizes = [2, 128], strides = [1, 1]} : vector<2x512xf32> to vector<2x128xf32>
    %254 = arith.negf %253 : vector<2x128xf32>
    %255 = math.exp %254 : vector<2x128xf32>
    %cst_68 = arith.constant 1.000000e+00 : f32
    %256 = vector.broadcast %cst_68 : f32 to vector<2x128xf32>
    %257 = arith.addf %256, %255 : vector<2x128xf32>
    %258 = arith.divf %256, %257 : vector<2x128xf32>
    %259 = vector.extract_strided_slice %252 {offsets = [0, 128], sizes = [2, 128], strides = [1, 1]} : vector<2x512xf32> to vector<2x128xf32>
    %260 = arith.negf %259 : vector<2x128xf32>
    %261 = math.exp %260 : vector<2x128xf32>
    %cst_69 = arith.constant 1.000000e+00 : f32
    %262 = vector.broadcast %cst_69 : f32 to vector<2x128xf32>
    %263 = arith.addf %262, %261 : vector<2x128xf32>
    %264 = arith.divf %262, %263 : vector<2x128xf32>
    %265 = vector.extract_strided_slice %252 {offsets = [0, 256], sizes = [2, 128], strides = [1, 1]} : vector<2x512xf32> to vector<2x128xf32>
    %266 = math.tanh %265 : vector<2x128xf32>
    %267 = vector.extract_strided_slice %252 {offsets = [0, 384], sizes = [2, 128], strides = [1, 1]} : vector<2x512xf32> to vector<2x128xf32>
    %268 = arith.negf %267 : vector<2x128xf32>
    %269 = math.exp %268 : vector<2x128xf32>
    %cst_70 = arith.constant 1.000000e+00 : f32
    %270 = vector.broadcast %cst_70 : f32 to vector<2x128xf32>
    %271 = arith.addf %270, %269 : vector<2x128xf32>
    %272 = arith.divf %270, %271 : vector<2x128xf32>
    %273 = arith.mulf %264, %242 : vector<2x128xf32>
    %274 = arith.mulf %258, %266 : vector<2x128xf32>
    %275 = arith.addf %273, %274 : vector<2x128xf32>
    %276 = math.tanh %275 : vector<2x128xf32>
    %277 = arith.mulf %272, %276 : vector<2x128xf32>
    %cst_71 = arith.constant 0.000000e+00 : f32
    %278 = vector.broadcast %cst_71 : f32 to vector<2x128xf32>
    %279 = arith.maximumf %277, %278 : vector<2x128xf32>
    %280 = vector.shape_cast %279 : vector<2x128xf32> to vector<2x1x128xf32>
    %c0_72 = arith.constant 0 : index
    %c7 = arith.constant 7 : index
    %c0_73 = arith.constant 0 : index
    %281 = vector.load %arg14[%c0_72, %c7, %c0_73] : memref<2x8x128xf32, #tpu.memory_space<vmem>>, vector<2x1x128xf32>
    tpu.vector_store %arg14[%c0_72, %c7, %c0_73], %280 {strides = array<i32>} : memref<2x8x128xf32, #tpu.memory_space<vmem>>, vector<2x1x128xf32>,
    %c0_74 = arith.constant 0 : index
    %c0_75 = arith.constant 0 : index
    %c0_76 = arith.constant 0 : index
    %282 = vector.load %arg14[%c0_74, %c0_75, %c0_76] : memref<2x8x128xf32, #tpu.memory_space<vmem>>, vector<2x8x128xf32>
    %283 = vector.shape_cast %282 : vector<2x8x128xf32> to vector<16x128xf32>
    %284 = arith.truncf %283 : vector<16x128xf32> to vector<16x128xbf16>
    %c0_77 = arith.constant 0 : index
    %c0_78 = arith.constant 0 : index
    %285 = vector.load %arg8[%c0_77, %c0_78] : memref<128x5xbf16, #tpu.memory_space<vmem>>, vector<128x5xbf16>
    %cst_79 = arith.constant dense<0.000000e+00> : vector<16x5xf32>
    %286 = tpu.matmul %284, %285, %cst_79 {dimension_numbers = #tpu.dot_dimension_numbers<[1], [0], [0], [1], [0, 0, 1, 1], [], []>} : vector<16x128xbf16>, vector<128x5xbf16>, vector<16x5xf32> -> vector<16x5xf32>
    %c0_80 = arith.constant 0 : index
    %c0_81 = arith.constant 0 : index
    %287 = vector.load %arg9[%c0_80, %c0_81] : memref<1x5xf32, #tpu.memory_space<vmem>>, vector<1x5xf32>
    %288 = vector.broadcast %287 : vector<1x5xf32> to vector<16x5xf32>
    %289 = arith.addf %286, %288 : vector<16x5xf32>
    %290 = vector.extract_strided_slice %289 {offsets = [0, 0], sizes = [8, 4], strides = [1, 1]} : vector<16x5xf32> to vector<8x4xf32>
    %cst_82 = arith.constant dense<0xFF800000> : vector<8xf32>
    %291 = vector.multi_reduction <maximumf>, %290, %cst_82 [1] : vector<8x4xf32> to vector<8xf32>
    %292 = vector.shape_cast %291 : vector<8xf32> to vector<8x1xf32>
    %cst_83 = arith.constant dense<0xFF800000> : vector<1xf32>
    %293 = vector.multi_reduction <maximumf>, %292, %cst_83 [0] : vector<8x1xf32> to vector<1xf32>
    %294 = vector.shape_cast %293 : vector<1xf32> to vector<1x1xf32>
    %295 = vector.broadcast %294 : vector<1x1xf32> to vector<8x4xf32>
    %296 = arith.subf %290, %295 : vector<8x4xf32>
    %297 = math.exp %296 : vector<8x4xf32>
    %cst_84 = arith.constant dense<0.000000e+00> : vector<8xf32>
    %298 = vector.multi_reduction <add>, %297, %cst_84 [1] : vector<8x4xf32> to vector<8xf32>
    %299 = vector.shape_cast %298 : vector<8xf32> to vector<8x1xf32>
    %cst_85 = arith.constant dense<0.000000e+00> : vector<1xf32>
    %300 = vector.multi_reduction <add>, %299, %cst_85 [0] : vector<8x1xf32> to vector<1xf32>
    %301 = vector.shape_cast %300 : vector<1xf32> to vector<1x1xf32>
    %302 = tpu.reciprocal %301 {approx = true} : vector<1x1xf32> -> vector<1x1xf32>
    %303 = vector.broadcast %302 : vector<1x1xf32> to vector<8x4xf32>
    %304 = arith.mulf %297, %303 : vector<8x4xf32>
    %c0_86 = arith.constant 0 : index
    %c0_87 = arith.constant 0 : index
    %c0_88 = arith.constant 0 : index
    %305 = vector.load %arg10[%c0_86, %c0_87, %c0_88] : memref<2x8x4xf32, #tpu.memory_space<vmem>>, vector<1x8x4xf32>
    %306 = vector.shape_cast %305 : vector<1x8x4xf32> to vector<8x4xf32>
    %307 = vector.shape_cast %304 : vector<8x4xf32> to vector<1x8x4xf32>
    tpu.vector_store %arg10[%c0_86, %c0_87, %c0_88], %307 {strides = array<i32>} : memref<2x8x4xf32, #tpu.memory_space<vmem>>, vector<1x8x4xf32>,
    %308 = vector.extract_strided_slice %289 {offsets = [8, 0], sizes = [8, 4], strides = [1, 1]} : vector<16x5xf32> to vector<8x4xf32>
    %cst_89 = arith.constant dense<0xFF800000> : vector<8xf32>
    %309 = vector.multi_reduction <maximumf>, %308, %cst_89 [1] : vector<8x4xf32> to vector<8xf32>
    %310 = vector.shape_cast %309 : vector<8xf32> to vector<8x1xf32>
    %cst_90 = arith.constant dense<0xFF800000> : vector<1xf32>
    %311 = vector.multi_reduction <maximumf>, %310, %cst_90 [0] : vector<8x1xf32> to vector<1xf32>
    %312 = vector.shape_cast %311 : vector<1xf32> to vector<1x1xf32>
    %313 = vector.broadcast %312 : vector<1x1xf32> to vector<8x4xf32>
    %314 = arith.subf %308, %313 : vector<8x4xf32>
    %315 = math.exp %314 : vector<8x4xf32>
    %cst_91 = arith.constant dense<0.000000e+00> : vector<8xf32>
    %316 = vector.multi_reduction <add>, %315, %cst_91 [1] : vector<8x4xf32> to vector<8xf32>
    %317 = vector.shape_cast %316 : vector<8xf32> to vector<8x1xf32>
    %cst_92 = arith.constant dense<0.000000e+00> : vector<1xf32>
    %318 = vector.multi_reduction <add>, %317, %cst_92 [0] : vector<8x1xf32> to vector<1xf32>
    %319 = vector.shape_cast %318 : vector<1xf32> to vector<1x1xf32>
    %320 = tpu.reciprocal %319 {approx = true} : vector<1x1xf32> -> vector<1x1xf32>
    %321 = vector.broadcast %320 : vector<1x1xf32> to vector<8x4xf32>
    %322 = arith.mulf %315, %321 : vector<8x4xf32>
    %c1_93 = arith.constant 1 : index
    %c0_94 = arith.constant 0 : index
    %c0_95 = arith.constant 0 : index
    %323 = vector.load %arg10[%c1_93, %c0_94, %c0_95] : memref<2x8x4xf32, #tpu.memory_space<vmem>>, vector<1x8x4xf32>
    %324 = vector.shape_cast %323 : vector<1x8x4xf32> to vector<8x4xf32>
    %325 = vector.shape_cast %322 : vector<8x4xf32> to vector<1x8x4xf32>
    tpu.vector_store %arg10[%c1_93, %c0_94, %c0_95], %325 {strides = array<i32>} : memref<2x8x4xf32, #tpu.memory_space<vmem>>, vector<1x8x4xf32>,
    %326 = vector.extract_strided_slice %289 {offsets = [0, 4], sizes = [16, 1], strides = [1, 1]} : vector<16x5xf32> to vector<16x1xf32>
    %c0_96 = arith.constant 0 : index
    %c0_97 = arith.constant 0 : index
    %327 = vector.load %arg11[%c0_96, %c0_97] : memref<16x1xf32, #tpu.memory_space<vmem>>, vector<16x1xf32>
    tpu.vector_store %arg11[%c0_96, %c0_97], %326 {strides = array<i32>} : memref<16x1xf32, #tpu.memory_space<vmem>>, vector<16x1xf32>,
    %c0_98 = arith.constant 0 : index
    %c0_99 = arith.constant 0 : index
    %328 = vector.load %arg12[%c0_98, %c0_99] : memref<2x128xf32, #tpu.memory_space<vmem>>, vector<2x128xf32>
    tpu.vector_store %arg12[%c0_98, %c0_99], %277 {strides = array<i32>} : memref<2x128xf32, #tpu.memory_space<vmem>>, vector<2x128xf32>,
    %c0_100 = arith.constant 0 : index
    %c0_101 = arith.constant 0 : index
    %329 = vector.load %arg13[%c0_100, %c0_101] : memref<2x128xf32, #tpu.memory_space<vmem>>, vector<2x128xf32>
    tpu.vector_store %arg13[%c0_100, %c0_101], %275 {strides = array<i32>} : memref<2x128xf32, #tpu.memory_space<vmem>>, vector<2x128xf32>,
    return
  }
}

</mosaic_0001>

<llo_original>
// kernel: actor_critic_pfn.1
$region0: #{actor_critic_pfn.1}
  #allocation0 [shape = 'u32[]', space=smem, size = 0x4, offset = 0x4, fixed_abs, tag = 'smem constant byte address 0x4 - core index']
  #allocation1 [shape = 'u32[72,128]{1,0:T(1,128)}', space=vmem, size = 0x9000, scoped, tag = 'internal scratch']
  #allocation2 [shape = 'f32[2,8,128]{2,1,0:T(8,128)}', space=vmem, size = 0x2000, scoped, tag = 'scratch operand']
  %s0 = inlined_call_operand.vmem [shape: f32[16,16], index: 0, kind: input, shape index: {}]
  %s1 = inlined_call_operand.vmem [shape: f32[2,128], index: 1, kind: input, shape index: {}]
  %s2 = inlined_call_operand.vmem [shape: f32[2,128], index: 2, kind: input, shape index: {}]
  %s3 = inlined_call_operand.vmem [shape: bf16[16,128], index: 3, kind: input, shape index: {}]
  %s4 = inlined_call_operand.vmem [shape: f32[1,128], index: 4, kind: input, shape index: {}]
  %s5 = inlined_call_operand.vmem [shape: bf16[128,512], index: 5, kind: input, shape index: {}]
  %s6 = inlined_call_operand.vmem [shape: bf16[128,512], index: 6, kind: input, shape index: {}]
  %s7 = inlined_call_operand.vmem [shape: f32[1,512], index: 7, kind: input, shape index: {}]
  %s8 = inlined_call_operand.vmem [shape: bf16[128,5], index: 8, kind: input, shape index: {}]
  %s9 = inlined_call_operand.vmem [shape: f32[1,5], index: 9, kind: input, shape index: {}]
  %s10 = inlined_call_operand.vmem [shape: f32[2,8,4], index: 10, kind: output, shape index: {0}]
  %s11 = inlined_call_operand.vmem [shape: f32[16,1], index: 11, kind: output, shape index: {1}]
  %s12 = inlined_call_operand.hbm [shape: f32[2,128], index: 12, kind: output, shape index: {2}]
  %s13 = inlined_call_operand.hbm [shape: f32[2,128], index: 13, kind: output, shape index: {3}]
  %14 = xla_tuple %s10, %s11, %s12, %s13
  %s15 = sld [smem:[#allocation0]]
  $region74: #{actor_critic_pfn.1} parent=0
    _
  %s17 = ssub.s32 1, %s15
  %s18 = scalar_select 0, %s17, %s15
  $region1: #{actor_critic_pfn.1} parent=0
    #allocation3 [shape = 'u8[1024]{0}', space=vmem, size = 0x400, scoped, tag = 'output window, operand 2, single buffered']
    #allocation4 [shape = 's32[1]{0}', space=sflag, size = 0x4, scoped, tag = 'scoped memory for actor_critic_pfn.1']
    #allocation5 [shape = 'u8[1024]{0}', space=vmem, size = 0x400, scoped, tag = 'output window, operand 3, single buffered']
    #allocation6 [shape = 's32[1]{0}', space=sflag, size = 0x4, scoped, tag = 'scoped memory for actor_critic_pfn.1']
    %19 = vsyncpa [#allocation4], 0
    %20 = vsyncpa [#allocation6], 0
    // Predicated region
    $region2: #{actor_critic_pfn.1} parent=1 // pred_check
      _
    $region3: #{actor_critic_pfn.1} parent=1 // pred_check_branch
      %22 = sbr.rel (0) target = $region5
    $region4: #{actor_critic_pfn.1} parent=1 // pred_region
      _
    $region5: #{actor_critic_pfn.1} parent=1 // pred_fallthru
      _
    // Predicated region
    $region6: #{actor_critic_pfn.1} parent=1 // pred_check
      _
    $region7: #{actor_critic_pfn.1} parent=1 // pred_check_branch
      %24 = sbr.rel (0) target = $region9
    $region8: #{actor_critic_pfn.1} parent=1 // pred_region
      _
    $region9: #{actor_critic_pfn.1} parent=1 // pred_fallthru
      _
    // Predicated region
    $region10: #{actor_critic_pfn.1} parent=1 // pred_check
      _
    $region11: #{actor_critic_pfn.1} parent=1 // pred_check_branch
      %26 = sbr.rel (0) target = $region13
    $region12: #{actor_critic_pfn.1} parent=1 // pred_region
      _
    $region13: #{actor_critic_pfn.1} parent=1 // pred_fallthru
      _
    // Predicated region
    $region14: #{actor_critic_pfn.1} parent=1 // pred_check
      _
    $region15: #{actor_critic_pfn.1} parent=1 // pred_check_branch
      %28 = sbr.rel (0) target = $region17
    $region16: #{actor_critic_pfn.1} parent=1 // pred_region
      _
    $region17: #{actor_critic_pfn.1} parent=1 // pred_fallthru
      _
    // Predicated region
    $region18: #{actor_critic_pfn.1} parent=1 // pred_check
      _
    $region19: #{actor_critic_pfn.1} parent=1 // pred_check_branch
      %30 = sbr.rel (0) target = $region21
    $region20: #{actor_critic_pfn.1} parent=1 // pred_region
      _
    $region21: #{actor_critic_pfn.1} parent=1 // pred_fallthru
      _
    // Predicated region
    $region22: #{actor_critic_pfn.1} parent=1 // pred_check
      _
    $region23: #{actor_critic_pfn.1} parent=1 // pred_check_branch
      %32 = sbr.rel (0) target = $region25
    $region24: #{actor_critic_pfn.1} parent=1 // pred_region
      _
    $region25: #{actor_critic_pfn.1} parent=1 // pred_fallthru
      _
    // Predicated region
    $region26: #{actor_critic_pfn.1} parent=1 // pred_check
      _
    $region27: #{actor_critic_pfn.1} parent=1 // pred_check_branch
      %34 = sbr.rel (0) target = $region29
    $region28: #{actor_critic_pfn.1} parent=1 // pred_region
      _
    $region29: #{actor_critic_pfn.1} parent=1 // pred_fallthru
      _
    // Predicated region
    $region30: #{actor_critic_pfn.1} parent=1 // pred_check
      _
    $region31: #{actor_critic_pfn.1} parent=1 // pred_check_branch
      %36 = sbr.rel (0) target = $region33
    $region32: #{actor_critic_pfn.1} parent=1 // pred_region
      _
    $region33: #{actor_critic_pfn.1} parent=1 // pred_fallthru
      _
    // Predicated region
    $region34: #{actor_critic_pfn.1} parent=1 // pred_check
      _
    $region35: #{actor_critic_pfn.1} parent=1 // pred_check_branch
      %38 = sbr.rel (0) target = $region37
    $region36: #{actor_critic_pfn.1} parent=1 // pred_region
      _
    $region37: #{actor_critic_pfn.1} parent=1 // pred_fallthru
      _
    // Predicated region
    $region38: #{actor_critic_pfn.1} parent=1 // pred_check
      _
    $region39: #{actor_critic_pfn.1} parent=1 // pred_check_branch
      %40 = sbr.rel (0) target = $region41
    $region40: #{actor_critic_pfn.1} parent=1 // pred_region
      _
    $region41: #{actor_critic_pfn.1} parent=1 // pred_fallthru
      _
    %v42 = vld [vmem:[%s0] sm:$0xff]
    %v43 = vld [vmem:[%s0 + $0x8] sm:$0xff]
    %v44 = vpack.c.bf16 %v43, %v42
    %v45 = vld [vmem:[%s3] sm:$0xf]
    %v46 = vld [vmem:[%s3 + $0x4] sm:$0xf]
    %v47 = vld [vmem:[%s4] sm:$0x1]
    %v49 = vperm.slane %v47, 0
    %v53 = vunpack.c.l.b16 %v45
    %v54 = vunpack.c.l.b16 %v46
    %v55 = vpack.c.b16 %v54, %v53
    %vm57 = vcmask 130048
    %v59 = vsel %vm57, %v44, 0
    %61 = vmatpush.bf16.msra.mxu0 0
    %62 = vmatpush.bf16.msra.mxu0 0
    %63 = vmatpush.bf16.msra.mxu0 0
    %64 = vmatpush.bf16.msra.mxu0 0
    %65 = vmatpush.bf16.msra.mxu0 0
    %66 = vmatpush.bf16.msra.mxu0 0
    %67 = vmatpush.bf16.msra.mxu0 0
    %68 = vmatpush.bf16.msra.mxu0 %v55
    %69 = vmatmul.bf16.gmra.mxu0 %v59
    %v70 = vpop.f32.mrf.mxu0
    %v71 = vadd.f32 %v49, %v70
    %v72 = vpop.f32.mrf.mxu0
    %v73 = vadd.f32 %v49, %v72
    %74 = vdwg.mxu0
    %v75 = vmax.f32 %v71, 0.0
    %v76 = vmax.f32 %v73, 0.0
    %v77 = vpack.c.bf16 %v76, %v75
    %v78 = vld [vmem:[%s5] sm:$0xff]
    %v79 = vld [vmem:[%s5 + $0x8] sm:$0xff]
    %v80 = vld [vmem:[%s5 + $0x10] sm:$0xff]
    %v81 = vld [vmem:[%s5 + $0x18] sm:$0xff]
    %v82 = vld [vmem:[%s5 + $0x20] sm:$0xff]
    %v83 = vld [vmem:[%s5 + $0x28] sm:$0xff]
    %v84 = vld [vmem:[%s5 + $0x30] sm:$0xff]
    %v85 = vld [vmem:[%s5 + $0x38] sm:$0xff]
    %v86 = vld [vmem:[%s5 + $0x40] sm:$0xff]
    %v87 = vld [vmem:[%s5 + $0x48] sm:$0xff]
    %v88 = vld [vmem:[%s5 + $0x50] sm:$0xff]
    %v89 = vld [vmem:[%s5 + $0x58] sm:$0xff]
    %v90 = vld [vmem:[%s5 + $0x60] sm:$0xff]
    %v91 = vld [vmem:[%s5 + $0x68] sm:$0xff]
    %v92 = vld [vmem:[%s5 + $0x70] sm:$0xff]
    %v93 = vld [vmem:[%s5 + $0x78] sm:$0xff]
    %v94 = vld [vmem:[%s5 + $0x80] sm:$0xff]
    %v95 = vld [vmem:[%s5 + $0x88] sm:$0xff]
    %v96 = vld [vmem:[%s5 + $0x90] sm:$0xff]
    %v97 = vld [vmem:[%s5 + $0x98] sm:$0xff]
    %v98 = vld [vmem:[%s5 + $0xa0] sm:$0xff]
    %v99 = vld [vmem:[%s5 + $0xa8] sm:$0xff]
    %v100 = vld [vmem:[%s5 + $0xb0] sm:$0xff]
    %v101 = vld [vmem:[%s5 + $0xb8] sm:$0xff]
    %v102 = vld [vmem:[%s5 + $0xc0] sm:$0xff]
    %v103 = vld [vmem:[%s5 + $0xc8] sm:$0xff]
    %v104 = vld [vmem:[%s5 + $0xd0] sm:$0xff]
    %v105 = vld [vmem:[%s5 + $0xd8] sm:$0xff]
    %v106 = vld [vmem:[%s5 + $0xe0] sm:$0xff]
    %v107 = vld [vmem:[%s5 + $0xe8] sm:$0xff]
    %v108 = vld [vmem:[%s5 + $0xf0] sm:$0xff]
    %v109 = vld [vmem:[%s5 + $0xf8] sm:$0xff]
    %v110 = vld [vmem:[%s7] sm:$0xf]
    %v112 = vperm.slane %v110, 0
    %v113 = vperm.slane %v110, 1
    %v114 = vperm.slane %v110, 2
    %v115 = vperm.slane %v110, 3
    %v152 = vunpack.c.l.b16 %v78
    %v153 = vunpack.c.h.b16 %v78
    %v154 = vunpack.c.l.b16 %v79
    %v155 = vunpack.c.h.b16 %v79
    %v156 = vunpack.c.l.b16 %v80
    %v157 = vunpack.c.h.b16 %v80
    %v158 = vunpack.c.l.b16 %v81
    %v159 = vunpack.c.h.b16 %v81
    %v160 = vunpack.c.l.b16 %v82
    %v161 = vunpack.c.h.b16 %v82
    %v162 = vunpack.c.l.b16 %v83
    %v163 = vunpack.c.h.b16 %v83
    %v164 = vunpack.c.l.b16 %v84
    %v165 = vunpack.c.h.b16 %v84
    %v166 = vunpack.c.l.b16 %v85
    %v167 = vunpack.c.h.b16 %v85
    %v168 = vunpack.c.l.b16 %v86
    %v169 = vunpack.c.h.b16 %v86
    %v170 = vunpack.c.l.b16 %v87
    %v171 = vunpack.c.h.b16 %v87
    %v172 = vunpack.c.l.b16 %v88
    %v173 = vunpack.c.h.b16 %v88
    %v174 = vunpack.c.l.b16 %v89
    %v175 = vunpack.c.h.b16 %v89
    %v176 = vunpack.c.l.b16 %v90
    %v177 = vunpack.c.h.b16 %v90
    %v178 = vunpack.c.l.b16 %v91
    %v179 = vunpack.c.h.b16 %v91
    %v180 = vunpack.c.l.b16 %v92
    %v181 = vunpack.c.h.b16 %v92
    %v182 = vunpack.c.l.b16 %v93
    %v183 = vunpack.c.h.b16 %v93
    %v184 = vunpack.c.l.b16 %v94
    %v185 = vunpack.c.h.b16 %v94
    %v186 = vunpack.c.l.b16 %v95
    %v187 = vunpack.c.h.b16 %v95
    %v188 = vunpack.c.l.b16 %v96
    %v189 = vunpack.c.h.b16 %v96
    %v190 = vunpack.c.l.b16 %v97
    %v191 = vunpack.c.h.b16 %v97
    %v192 = vunpack.c.l.b16 %v98
    %v193 = vunpack.c.h.b16 %v98
    %v194 = vunpack.c.l.b16 %v99
    %v195 = vunpack.c.h.b16 %v99
    %v196 = vunpack.c.l.b16 %v100
    %v197 = vunpack.c.h.b16 %v100
    %v198 = vunpack.c.l.b16 %v101
    %v199 = vunpack.c.h.b16 %v101
    %v200 = vunpack.c.l.b16 %v102
    %v201 = vunpack.c.h.b16 %v102
    %v202 = vunpack.c.l.b16 %v103
    %v203 = vunpack.c.h.b16 %v103
    %v204 = vunpack.c.l.b16 %v104
    %v205 = vunpack.c.h.b16 %v104
    %v206 = vunpack.c.l.b16 %v105
    %v207 = vunpack.c.h.b16 %v105
    %v208 = vunpack.c.l.b16 %v106
    %v209 = vunpack.c.h.b16 %v106
    %v210 = vunpack.c.l.b16 %v107
    %v211 = vunpack.c.h.b16 %v107
    %v212 = vunpack.c.l.b16 %v108
    %v213 = vunpack.c.h.b16 %v108
    %v214 = vunpack.c.l.b16 %v109
    %v215 = vunpack.c.h.b16 %v109
    %v216 = vpack.c.b16 %v156, %v152
    %v217 = vpack.c.b16 %v157, %v153
    %v218 = vpack.c.b16 %v158, %v154
    %v219 = vpack.c.b16 %v159, %v155
    %v220 = vpack.c.b16 %v164, %v160
    %v221 = vpack.c.b16 %v165, %v161
    %v222 = vpack.c.b16 %v166, %v162
    %v223 = vpack.c.b16 %v167, %v163
    %v224 = vpack.c.b16 %v172, %v168
    %v225 = vpack.c.b16 %v173, %v169
    %v226 = vpack.c.b16 %v174, %v170
    %v227 = vpack.c.b16 %v175, %v171
    %v228 = vpack.c.b16 %v180, %v176
    %v229 = vpack.c.b16 %v181, %v177
    %v230 = vpack.c.b16 %v182, %v178
    %v231 = vpack.c.b16 %v183, %v179
    %v232 = vpack.c.b16 %v188, %v184
    %v233 = vpack.c.b16 %v189, %v185
    %v234 = vpack.c.b16 %v190, %v186
    %v235 = vpack.c.b16 %v191, %v187
    %v236 = vpack.c.b16 %v196, %v192
    %v237 = vpack.c.b16 %v197, %v193
    %v238 = vpack.c.b16 %v198, %v194
    %v239 = vpack.c.b16 %v199, %v195
    %v240 = vpack.c.b16 %v204, %v200
    %v241 = vpack.c.b16 %v205, %v201
    %v242 = vpack.c.b16 %v206, %v202
    %v243 = vpack.c.b16 %v207, %v203
    %v244 = vpack.c.b16 %v212, %v208
    %v245 = vpack.c.b16 %v213, %v209
    %v246 = vpack.c.b16 %v214, %v210
    %v247 = vpack.c.b16 %v215, %v211
    %280 = vmatpush.bf16.msra.mxu0 %v244
    %281 = vmatpush.bf16.msra.mxu0 %v240
    %282 = vmatpush.bf16.msra.mxu0 %v236
    %283 = vmatpush.bf16.msra.mxu0 %v232
    %284 = vmatpush.bf16.msra.mxu0 %v228
    %285 = vmatpush.bf16.msra.mxu0 %v224
    %286 = vmatpush.bf16.msra.mxu0 %v220
    %287 = vmatpush.bf16.msra.mxu0 %v216
    %288 = vmatmul.bf16.gmra.mxu0 %v77
    %v289 = vpop.f32.mrf.mxu0
    %v290 = vadd.f32 %v112, %v289
    %v291 = vpop.f32.mrf.mxu0
    %v292 = vadd.f32 %v112, %v291
    %293 = vdwg.mxu0
    %294 = vmatpush.bf16.msra.mxu0 %v245
    %295 = vmatpush.bf16.msra.mxu0 %v241
    %296 = vmatpush.bf16.msra.mxu0 %v237
    %297 = vmatpush.bf16.msra.mxu0 %v233
    %298 = vmatpush.bf16.msra.mxu0 %v229
    %299 = vmatpush.bf16.msra.mxu0 %v225
    %300 = vmatpush.bf16.msra.mxu0 %v221
    %301 = vmatpush.bf16.msra.mxu0 %v217
    %302 = vmatmul.bf16.gmra.mxu0 %v77
    %v303 = vpop.f32.mrf.mxu0
    %v304 = vadd.f32 %v113, %v303
    %v305 = vpop.f32.mrf.mxu0
    %v306 = vadd.f32 %v113, %v305
    %307 = vdwg.mxu0
    %308 = vmatpush.bf16.msra.mxu0 %v246
    %309 = vmatpush.bf16.msra.mxu0 %v242
    %310 = vmatpush.bf16.msra.mxu0 %v238
    %311 = vmatpush.bf16.msra.mxu0 %v234
    %312 = vmatpush.bf16.msra.mxu0 %v230
    %313 = vmatpush.bf16.msra.mxu0 %v226
    %314 = vmatpush.bf16.msra.mxu0 %v222
    %315 = vmatpush.bf16.msra.mxu0 %v218
    %316 = vmatmul.bf16.gmra.mxu0 %v77
    %v317 = vpop.f32.mrf.mxu0
    %v318 = vadd.f32 %v114, %v317
    %v319 = vpop.f32.mrf.mxu0
    %v320 = vadd.f32 %v114, %v319
    %321 = vdwg.mxu0
    %322 = vmatpush.bf16.msra.mxu0 %v247
    %323 = vmatpush.bf16.msra.mxu0 %v243
    %324 = vmatpush.bf16.msra.mxu0 %v239
    %325 = vmatpush.bf16.msra.mxu0 %v235
    %326 = vmatpush.bf16.msra.mxu0 %v231
    %327 = vmatpush.bf16.msra.mxu0 %v227
    %328 = vmatpush.bf16.msra.mxu0 %v223
    %329 = vmatpush.bf16.msra.mxu0 %v219
    %330 = vmatmul.bf16.gmra.mxu0 %v77
    %v331 = vpop.f32.mrf.mxu0
    %v332 = vadd.f32 %v115, %v331
    %v333 = vpop.f32.mrf.mxu0
    %v334 = vadd.f32 %v115, %v333
    %335 = vdwg.mxu0
    %v336 = vld [vmem:[%s6] sm:$0xff]
    %v337 = vld [vmem:[%s6 + $0x8] sm:$0xff]
    %v338 = vld [vmem:[%s6 + $0x10] sm:$0xff]
    %v339 = vld [vmem:[%s6 + $0x18] sm:$0xff]
    %v340 = vld [vmem:[%s6 + $0x20] sm:$0xff]
    %v341 = vld [vmem:[%s6 + $0x28] sm:$0xff]
    %v342 = vld [vmem:[%s6 + $0x30] sm:$0xff]
    %v343 = vld [vmem:[%s6 + $0x38] sm:$0xff]
    %v344 = vld [vmem:[%s6 + $0x40] sm:$0xff]
    %v345 = vld [vmem:[%s6 + $0x48] sm:$0xff]
    %v346 = vld [vmem:[%s6 + $0x50] sm:$0xff]
    %v347 = vld [vmem:[%s6 + $0x58] sm:$0xff]
    %v348 = vld [vmem:[%s6 + $0x60] sm:$0xff]
    %v349 = vld [vmem:[%s6 + $0x68] sm:$0xff]
    %v350 = vld [vmem:[%s6 + $0x70] sm:$0xff]
    %v351 = vld [vmem:[%s6 + $0x78] sm:$0xff]
    %v352 = vld [vmem:[%s6 + $0x80] sm:$0xff]
    %v353 = vld [vmem:[%s6 + $0x88] sm:$0xff]
    %v354 = vld [vmem:[%s6 + $0x90] sm:$0xff]
    %v355 = vld [vmem:[%s6 + $0x98] sm:$0xff]
    %v356 = vld [vmem:[%s6 + $0xa0] sm:$0xff]
    %v357 = vld [vmem:[%s6 + $0xa8] sm:$0xff]
    %v358 = vld [vmem:[%s6 + $0xb0] sm:$0xff]
    %v359 = vld [vmem:[%s6 + $0xb8] sm:$0xff]
    %v360 = vld [vmem:[%s6 + $0xc0] sm:$0xff]
    %v361 = vld [vmem:[%s6 + $0xc8] sm:$0xff]
    %v362 = vld [vmem:[%s6 + $0xd0] sm:$0xff]
    %v363 = vld [vmem:[%s6 + $0xd8] sm:$0xff]
    %v364 = vld [vmem:[%s6 + $0xe0] sm:$0xff]
    %v365 = vld [vmem:[%s6 + $0xe8] sm:$0xff]
    %v366 = vld [vmem:[%s6 + $0xf0] sm:$0xff]
    %v367 = vld [vmem:[%s6 + $0xf8] sm:$0xff]
    %v368 = vld [vmem:[%s1] sm:$0x3]
    %v369 = vld [vmem:[%s2] sm:$0x3]
    %v370 = vpack.c.bf16 %v368, %v368
    %v403 = vunpack.c.l.b16 %v336
    %v404 = vunpack.c.h.b16 %v336
    %v405 = vunpack.c.l.b16 %v337
    %v406 = vunpack.c.h.b16 %v337
    %v407 = vunpack.c.l.b16 %v338
    %v408 = vunpack.c.h.b16 %v338
    %v409 = vunpack.c.l.b16 %v339
    %v410 = vunpack.c.h.b16 %v339
    %v411 = vunpack.c.l.b16 %v340
    %v412 = vunpack.c.h.b16 %v340
    %v413 = vunpack.c.l.b16 %v341
    %v414 = vunpack.c.h.b16 %v341
    %v415 = vunpack.c.l.b16 %v342
    %v416 = vunpack.c.h.b16 %v342
    %v417 = vunpack.c.l.b16 %v343
    %v418 = vunpack.c.h.b16 %v343
    %v419 = vunpack.c.l.b16 %v344
    %v420 = vunpack.c.h.b16 %v344
    %v421 = vunpack.c.l.b16 %v345
    %v422 = vunpack.c.h.b16 %v345
    %v423 = vunpack.c.l.b16 %v346
    %v424 = vunpack.c.h.b16 %v346
    %v425 = vunpack.c.l.b16 %v347
    %v426 = vunpack.c.h.b16 %v347
    %v427 = vunpack.c.l.b16 %v348
    %v428 = vunpack.c.h.b16 %v348
    %v429 = vunpack.c.l.b16 %v349
    %v430 = vunpack.c.h.b16 %v349
    %v431 = vunpack.c.l.b16 %v350
    %v432 = vunpack.c.h.b16 %v350
    %v433 = vunpack.c.l.b16 %v351
    %v434 = vunpack.c.h.b16 %v351
    %v435 = vunpack.c.l.b16 %v352
    %v436 = vunpack.c.h.b16 %v352
    %v437 = vunpack.c.l.b16 %v353
    %v438 = vunpack.c.h.b16 %v353
    %v439 = vunpack.c.l.b16 %v354
    %v440 = vunpack.c.h.b16 %v354
    %v441 = vunpack.c.l.b16 %v355
    %v442 = vunpack.c.h.b16 %v355
    %v443 = vunpack.c.l.b16 %v356
    %v444 = vunpack.c.h.b16 %v356
    %v445 = vunpack.c.l.b16 %v357
    %v446 = vunpack.c.h.b16 %v357
    %v447 = vunpack.c.l.b16 %v358
    %v448 = vunpack.c.h.b16 %v358
    %v449 = vunpack.c.l.b16 %v359
    %v450 = vunpack.c.h.b16 %v359
    %v451 = vunpack.c.l.b16 %v360
    %v452 = vunpack.c.h.b16 %v360
    %v453 = vunpack.c.l.b16 %v361
    %v454 = vunpack.c.h.b16 %v361
    %v455 = vunpack.c.l.b16 %v362
    %v456 = vunpack.c.h.b16 %v362
    %v457 = vunpack.c.l.b16 %v363
    %v458 = vunpack.c.h.b16 %v363
    %v459 = vunpack.c.l.b16 %v364
    %v460 = vunpack.c.h.b16 %v364
    %v461 = vunpack.c.l.b16 %v365
    %v462 = vunpack.c.h.b16 %v365
    %v463 = vunpack.c.l.b16 %v366
    %v464 = vunpack.c.h.b16 %v366
    %v465 = vunpack.c.l.b16 %v367
    %v466 = vunpack.c.h.b16 %v367
    %v467 = vpack.c.b16 %v407, %v403
    %v468 = vpack.c.b16 %v408, %v404
    %v469 = vpack.c.b16 %v409, %v405
    %v470 = vpack.c.b16 %v410, %v406
    %v471 = vpack.c.b16 %v415, %v411
    %v472 = vpack.c.b16 %v416, %v412
    %v473 = vpack.c.b16 %v417, %v413
    %v474 = vpack.c.b16 %v418, %v414
    %v475 = vpack.c.b16 %v423, %v419
    %v476 = vpack.c.b16 %v424, %v420
    %v477 = vpack.c.b16 %v425, %v421
    %v478 = vpack.c.b16 %v426, %v422
    %v479 = vpack.c.b16 %v431, %v427
    %v480 = vpack.c.b16 %v432, %v428
    %v481 = vpack.c.b16 %v433, %v429
    %v482 = vpack.c.b16 %v434, %v430
    %v483 = vpack.c.b16 %v439, %v435
    %v484 = vpack.c.b16 %v440, %v436
    %v485 = vpack.c.b16 %v441, %v437
    %v486 = vpack.c.b16 %v442, %v438
    %v487 = vpack.c.b16 %v447, %v443
    %v488 = vpack.c.b16 %v448, %v444
    %v489 = vpack.c.b16 %v449, %v445
    %v490 = vpack.c.b16 %v450, %v446
    %v491 = vpack.c.b16 %v455, %v451
    %v492 = vpack.c.b16 %v456, %v452
    %v493 = vpack.c.b16 %v457, %v453
    %v494 = vpack.c.b16 %v458, %v454
    %v495 = vpack.c.b16 %v463, %v459
    %v496 = vpack.c.b16 %v464, %v460
    %v497 = vpack.c.b16 %v465, %v461
    %v498 = vpack.c.b16 %v466, %v462
    %531 = vmatpush.bf16.msra.mxu0 %v495
    %532 = vmatpush.bf16.msra.mxu0 %v491
    %533 = vmatpush.bf16.msra.mxu0 %v487
    %534 = vmatpush.bf16.msra.mxu0 %v483
    %535 = vmatpush.bf16.msra.mxu0 %v479
    %536 = vmatpush.bf16.msra.mxu0 %v475
    %537 = vmatpush.bf16.msra.mxu0 %v471
    %538 = vmatpush.bf16.msra.mxu0 %v467
    %539 = vmatmul.bf16.gmra.mxu0 %v370
    %v540 = vpop.f32.mrf.mxu0
    %v541 = vadd.f32 0.0, %v540
    %v542 = vpop.f32.mrf.mxu0
    %543 = vdwg.mxu0
    %544 = vmatpush.bf16.msra.mxu0 %v496
    %545 = vmatpush.bf16.msra.mxu0 %v492
    %546 = vmatpush.bf16.msra.mxu0 %v488
    %547 = vmatpush.bf16.msra.mxu0 %v484
    %548 = vmatpush.bf16.msra.mxu0 %v480
    %549 = vmatpush.bf16.msra.mxu0 %v476
    %550 = vmatpush.bf16.msra.mxu0 %v472
    %551 = vmatpush.bf16.msra.mxu0 %v468
    %552 = vmatmul.bf16.gmra.mxu0 %v370
    %v553 = vpop.f32.mrf.mxu0
    %v554 = vadd.f32 0.0, %v553
    %v555 = vpop.f32.mrf.mxu0
    %556 = vdwg.mxu0
    %557 = vmatpush.bf16.msra.mxu0 %v497
    %558 = vmatpush.bf16.msra.mxu0 %v493
    %559 = vmatpush.bf16.msra.mxu0 %v489
    %560 = vmatpush.bf16.msra.mxu0 %v485
    %561 = vmatpush.bf16.msra.mxu0 %v481
    %562 = vmatpush.bf16.msra.mxu0 %v477
    %563 = vmatpush.bf16.msra.mxu0 %v473
    %564 = vmatpush.bf16.msra.mxu0 %v469
    %565 = vmatmul.bf16.gmra.mxu0 %v370
    %v566 = vpop.f32.mrf.mxu0
    %v567 = vadd.f32 0.0, %v566
    %v568 = vpop.f32.mrf.mxu0
    %569 = vdwg.mxu0
    %570 = vmatpush.bf16.msra.mxu0 %v498
    %571 = vmatpush.bf16.msra.mxu0 %v494
    %572 = vmatpush.bf16.msra.mxu0 %v490
    %573 = vmatpush.bf16.msra.mxu0 %v486
    %574 = vmatpush.bf16.msra.mxu0 %v482
    %575 = vmatpush.bf16.msra.mxu0 %v478
    %576 = vmatpush.bf16.msra.mxu0 %v474
    %577 = vmatpush.bf16.msra.mxu0 %v470
    %578 = vmatmul.bf16.gmra.mxu0 %v370
    %v579 = vpop.f32.mrf.mxu0
    %v580 = vadd.f32 0.0, %v579
    %v581 = vpop.f32.mrf.mxu0
    %582 = vdwg.mxu0
    %v583 = vadd.f32 %v290, %v541
    %v584 = vadd.f32 %v304, %v554
    %v585 = vadd.f32 %v318, %v567
    %v586 = vadd.f32 %v332, %v580
    %v587 = vxor.u32 %v583, 2147483648
    %v588 = vmul.f32 %v587, 1.442695
    %v589 = vpow.pop %v588
    %v590 = vadd.f32 %v589, 1.0
    %v591 = vrcp.pop %v590
    %v592 = vmul.f32 %v590, %v591
    %v593 = vsub.f32 1.0, %v592
    %v594 = vmul.f32 %v591, %v593
    %v595 = vadd.f32 %v591, %v594
    %vm596 = vweird.f32 %v590
    %vm597 = vweird.f32 %v591
    %vm598 = vmor %vm596, %vm597
    %v599 = vsel %vm598, %v591, %v595
    %v600 = vand.u32 2147483647, %v590
    %vm601 = vcmp.eq.f32.partialorder %v600, 8.507059e+37
    %v602 = vand.u32 %v590, 2147483648
    %v603 = vor.u32 1.1754944e-38, %v602
    %v604 = vsel %vm601, %v603, %v599
    %v605 = vmul.f32 1.0, %v604
    %v606 = vxor.u32 %v584, 2147483648
    %v607 = vmul.f32 %v606, 1.442695
    %v608 = vpow.pop %v607
    %v609 = vadd.f32 %v608, 1.0
    %v610 = vrcp.pop %v609
    %v611 = vmul.f32 %v609, %v610
    %v612 = vsub.f32 1.0, %v611
    %v613 = vmul.f32 %v610, %v612
    %v614 = vadd.f32 %v610, %v613
    %vm615 = vweird.f32 %v609
    %vm616 = vweird.f32 %v610
    %vm617 = vmor %vm615, %vm616
    %v618 = vsel %vm617, %v610, %v614
    %v619 = vand.u32 2147483647, %v609
    %vm620 = vcmp.eq.f32.partialorder %v619, 8.507059e+37
    %v621 = vand.u32 %v609, 2147483648
    %v622 = vor.u32 1.1754944e-38, %v621
    %v623 = vsel %vm620, %v622, %v618
    %v624 = vmul.f32 1.0, %v623
    %v625 = vtanh.pop %v585
    %v626 = vxor.u32 %v586, 2147483648
    %v627 = vmul.f32 %v626, 1.442695
    %v628 = vpow.pop %v627
    %v629 = vadd.f32 %v628, 1.0
    %v630 = vrcp.pop %v629
    %v631 = vmul.f32 %v629, %v630
    %v632 = vsub.f32 1.0, %v631
    %v633 = vmul.f32 %v630, %v632
    %v634 = vadd.f32 %v630, %v633
    %vm635 = vweird.f32 %v629
    %vm636 = vweird.f32 %v630
    %vm637 = vmor %vm635, %vm636
    %v638 = vsel %vm637, %v630, %v634
    %v639 = vand.u32 2147483647, %v629
    %vm640 = vcmp.eq.f32.partialorder %v639, 8.507059e+37
    %v641 = vand.u32 %v629, 2147483648
    %v642 = vor.u32 1.1754944e-38, %v641
    %v643 = vsel %vm640, %v642, %v638
    %v644 = vmul.f32 1.0, %v643
    %v645 = vmul.f32 %v624, %v369
    %v646 = vmul.f32 %v605, %v625
    %v647 = vadd.f32 %v645, %v646
    %v648 = vtanh.pop %v647
    %v649 = vmul.f32 %v644, %v648
    %v650 = vmax.f32 %v649, 0.0
    %v652 = vrot.slane %v650, 1
    %654 = vst [vmem:[#allocation2] sm:$0x1] %v650
    %655 = vst [vmem:[#allocation2 + $0x8] sm:$0x1] %v652
    %v656 = vpack.c.bf16 %v649, %v649
    %657 = vmatpush.bf16.msra.mxu0 %v495
    %658 = vmatpush.bf16.msra.mxu0 %v491
    %659 = vmatpush.bf16.msra.mxu0 %v487
    %660 = vmatpush.bf16.msra.mxu0 %v483
    %661 = vmatpush.bf16.msra.mxu0 %v479
    %662 = vmatpush.bf16.msra.mxu0 %v475
    %663 = vmatpush.bf16.msra.mxu0 %v471
    %664 = vmatpush.bf16.msra.mxu0 %v467
    %665 = vmatmul.bf16.gmra.mxu0 %v656
    %v666 = vpop.f32.mrf.mxu0
    %v667 = vadd.f32 0.0, %v666
    %v668 = vpop.f32.mrf.mxu0
    %669 = vdwg.mxu0
    %670 = vmatpush.bf16.msra.mxu0 %v496
    %671 = vmatpush.bf16.msra.mxu0 %v492
    %672 = vmatpush.bf16.msra.mxu0 %v488
    %673 = vmatpush.bf16.msra.mxu0 %v484
    %674 = vmatpush.bf16.msra.mxu0 %v480
    %675 = vmatpush.bf16.msra.mxu0 %v476
    %676 = vmatpush.bf16.msra.mxu0 %v472
    %677 = vmatpush.bf16.msra.mxu0 %v468
    %678 = vmatmul.bf16.gmra.mxu0 %v656
    %v679 = vpop.f32.mrf.mxu0
    %v680 = vadd.f32 0.0, %v679
    %v681 = vpop.f32.mrf.mxu0
    %682 = vdwg.mxu0
    %683 = vmatpush.bf16.msra.mxu0 %v497
    %684 = vmatpush.bf16.msra.mxu0 %v493
    %685 = vmatpush.bf16.msra.mxu0 %v489
    %686 = vmatpush.bf16.msra.mxu0 %v485
    %687 = vmatpush.bf16.msra.mxu0 %v481
    %688 = vmatpush.bf16.msra.mxu0 %v477
    %689 = vmatpush.bf16.msra.mxu0 %v473
    %690 = vmatpush.bf16.msra.mxu0 %v469
    %691 = vmatmul.bf16.gmra.mxu0 %v656
    %v692 = vpop.f32.mrf.mxu0
    %v693 = vadd.f32 0.0, %v692
    %v694 = vpop.f32.mrf.mxu0
    %695 = vdwg.mxu0
    %696 = vmatpush.bf16.msra.mxu0 %v498
    %697 = vmatpush.bf16.msra.mxu0 %v494
    %698 = vmatpush.bf16.msra.mxu0 %v490
    %699 = vmatpush.bf16.msra.mxu0 %v486
    %700 = vmatpush.bf16.msra.mxu0 %v482
    %701 = vmatpush.bf16.msra.mxu0 %v478
    %702 = vmatpush.bf16.msra.mxu0 %v474
    %703 = vmatpush.bf16.msra.mxu0 %v470
    %704 = vmatmul.bf16.gmra.mxu0 %v656
    %v705 = vpop.f32.mrf.mxu0
    %v706 = vadd.f32 0.0, %v705
    %v707 = vpop.f32.mrf.mxu0
    %708 = vdwg.mxu0
    %v713 = vrot.slane %v667, 6
    %v714 = vrot.slane %v680, 6
    %v715 = vrot.slane %v693, 6
    %v716 = vrot.slane %v706, 6
    %v721 = vadd.f32 %v290, %v713
    %v722 = vadd.f32 %v304, %v714
    %v723 = vadd.f32 %v318, %v715
    %v724 = vadd.f32 %v332, %v716
    %v725 = vxor.u32 %v721, 2147483648
    %v726 = vmul.f32 %v725, 1.442695
    %v727 = vpow.pop %v726
    %v728 = vadd.f32 %v727, 1.0
    %v729 = vrcp.pop %v728
    %v730 = vmul.f32 %v728, %v729
    %v731 = vsub.f32 1.0, %v730
    %v732 = vmul.f32 %v729, %v731
    %v733 = vadd.f32 %v729, %v732
    %vm734 = vweird.f32 %v728
    %vm735 = vweird.f32 %v729
    %vm736 = vmor %vm734, %vm735
    %v737 = vsel %vm736, %v729, %v733
    %v738 = vand.u32 2147483647, %v728
    %vm739 = vcmp.eq.f32.partialorder %v738, 8.507059e+37
    %v740 = vand.u32 %v728, 2147483648
    %v741 = vor.u32 1.1754944e-38, %v740
    %v742 = vsel %vm739, %v741, %v737
    %v743 = vmul.f32 1.0, %v742
    %v744 = vxor.u32 %v722, 2147483648
    %v745 = vmul.f32 %v744, 1.442695
    %v746 = vpow.pop %v745
    %v747 = vadd.f32 %v746, 1.0
    %v748 = vrcp.pop %v747
    %v749 = vmul.f32 %v747, %v748
    %v750 = vsub.f32 1.0, %v749
    %v751 = vmul.f32 %v748, %v750
    %v752 = vadd.f32 %v748, %v751
    %vm753 = vweird.f32 %v747
    %vm754 = vweird.f32 %v748
    %vm755 = vmor %vm753, %vm754
    %v756 = vsel %vm755, %v748, %v752
    %v757 = vand.u32 2147483647, %v747
    %vm758 = vcmp.eq.f32.partialorder %v757, 8.507059e+37
    %v759 = vand.u32 %v747, 2147483648
    %v760 = vor.u32 1.1754944e-38, %v759
    %v761 = vsel %vm758, %v760, %v756
    %v762 = vmul.f32 1.0, %v761
    %v763 = vtanh.pop %v723
    %v764 = vxor.u32 %v724, 2147483648
    %v765 = vmul.f32 %v764, 1.442695
    %v766 = vpow.pop %v765
    %v767 = vadd.f32 %v766, 1.0
    %v768 = vrcp.pop %v767
    %v769 = vmul.f32 %v767, %v768
    %v770 = vsub.f32 1.0, %v769
    %v771 = vmul.f32 %v768, %v770
    %v772 = vadd.f32 %v768, %v771
    %vm773 = vweird.f32 %v767
    %vm774 = vweird.f32 %v768
    %vm775 = vmor %vm773, %vm774
    %v776 = vsel %vm775, %v768, %v772
    %v777 = vand.u32 2147483647, %v767
    %vm778 = vcmp.eq.f32.partialorder %v777, 8.507059e+37
    %v779 = vand.u32 %v767, 2147483648
    %v780 = vor.u32 1.1754944e-38, %v779
    %v781 = vsel %vm778, %v780, %v776
    %v782 = vmul.f32 1.0, %v781
    %v784 = vrot.slane %v647, 6
    %v786 = vmul.f32 %v762, %v784
    %v787 = vmul.f32 %v743, %v763
    %v788 = vadd.f32 %v786, %v787
    %v789 = vtanh.pop %v788
    %v790 = vmul.f32 %v782, %v789
    %v791 = vmax.f32 %v790, 0.0
    %793 = vst [vmem:[#allocation1] sm:$0xff] %v791
    %s794 = scalar_lea.vmem [#allocation1], 2
    %v795 = vld [vmem:[%s794] ss:$9 sm:$0xff]
    %s796 = scalar_lea.vmem [#allocation1], 3
    %v797 = vld [vmem:[%s796] ss:$9 sm:$0xff]
    %800 = vst [vmem:[#allocation2 + $0x1] sm:$0x1] %v795
    %801 = vst [vmem:[#allocation2 + $0x9] sm:$0x1] %v797
    %v802 = vpack.c.bf16 %v790, %v790
    %v804 = vrot.slane %v802, 1
    %806 = vmatpush.bf16.msra.mxu0 %v495
    %807 = vmatpush.bf16.msra.mxu0 %v491
    %808 = vmatpush.bf16.msra.mxu0 %v487
    %809 = vmatpush.bf16.msra.mxu0 %v483
    %810 = vmatpush.bf16.msra.mxu0 %v479
    %811 = vmatpush.bf16.msra.mxu0 %v475
    %812 = vmatpush.bf16.msra.mxu0 %v471
    %813 = vmatpush.bf16.msra.mxu0 %v467
    %814 = vmatmul.bf16.gmra.mxu0 %v804
    %v815 = vpop.f32.mrf.mxu0
    %v816 = vadd.f32 0.0, %v815
    %v817 = vpop.f32.mrf.mxu0
    %818 = vdwg.mxu0
    %819 = vmatpush.bf16.msra.mxu0 %v496
    %820 = vmatpush.bf16.msra.mxu0 %v492
    %821 = vmatpush.bf16.msra.mxu0 %v488
    %822 = vmatpush.bf16.msra.mxu0 %v484
    %823 = vmatpush.bf16.msra.mxu0 %v480
    %824 = vmatpush.bf16.msra.mxu0 %v476
    %825 = vmatpush.bf16.msra.mxu0 %v472
    %826 = vmatpush.bf16.msra.mxu0 %v468
    %827 = vmatmul.bf16.gmra.mxu0 %v804
    %v828 = vpop.f32.mrf.mxu0
    %v829 = vadd.f32 0.0, %v828
    %v830 = vpop.f32.mrf.mxu0
    %831 = vdwg.mxu0
    %832 = vmatpush.bf16.msra.mxu0 %v497
    %833 = vmatpush.bf16.msra.mxu0 %v493
    %834 = vmatpush.bf16.msra.mxu0 %v489
    %835 = vmatpush.bf16.msra.mxu0 %v485
    %836 = vmatpush.bf16.msra.mxu0 %v481
    %837 = vmatpush.bf16.msra.mxu0 %v477
    %838 = vmatpush.bf16.msra.mxu0 %v473
    %839 = vmatpush.bf16.msra.mxu0 %v469
    %840 = vmatmul.bf16.gmra.mxu0 %v804
    %v841 = vpop.f32.mrf.mxu0
    %v842 = vadd.f32 0.0, %v841
    %v843 = vpop.f32.mrf.mxu0
    %844 = vdwg.mxu0
    %845 = vmatpush.bf16.msra.mxu0 %v498
    %846 = vmatpush.bf16.msra.mxu0 %v494
    %847 = vmatpush.bf16.msra.mxu0 %v490
    %848 = vmatpush.bf16.msra.mxu0 %v486
    %849 = vmatpush.bf16.msra.mxu0 %v482
    %850 = vmatpush.bf16.msra.mxu0 %v478
    %851 = vmatpush.bf16.msra.mxu0 %v474
    %852 = vmatpush.bf16.msra.mxu0 %v470
    %853 = vmatmul.bf16.gmra.mxu0 %v804
    %v854 = vpop.f32.mrf.mxu0
    %v855 = vadd.f32 0.0, %v854
    %v856 = vpop.f32.mrf.mxu0
    %857 = vdwg.mxu0
    %v862 = vrot.slane %v816, 4
    %v863 = vrot.slane %v829, 4
    %v864 = vrot.slane %v842, 4
    %v865 = vrot.slane %v855, 4
    %v870 = vadd.f32 %v290, %v862
    %v871 = vadd.f32 %v304, %v863
    %v872 = vadd.f32 %v318, %v864
    %v873 = vadd.f32 %v332, %v865
    %v874 = vxor.u32 %v870, 2147483648
    %v875 = vmul.f32 %v874, 1.442695
    %v876 = vpow.pop %v875
    %v877 = vadd.f32 %v876, 1.0
    %v878 = vrcp.pop %v877
    %v879 = vmul.f32 %v877, %v878
    %v880 = vsub.f32 1.0, %v879
    %v881 = vmul.f32 %v878, %v880
    %v882 = vadd.f32 %v878, %v881
    %vm883 = vweird.f32 %v877
    %vm884 = vweird.f32 %v878
    %vm885 = vmor %vm883, %vm884
    %v886 = vsel %vm885, %v878, %v882
    %v887 = vand.u32 2147483647, %v877
    %vm888 = vcmp.eq.f32.partialorder %v887, 8.507059e+37
    %v889 = vand.u32 %v877, 2147483648
    %v890 = vor.u32 1.1754944e-38, %v889
    %v891 = vsel %vm888, %v890, %v886
    %v892 = vmul.f32 1.0, %v891
    %v893 = vxor.u32 %v871, 2147483648
    %v894 = vmul.f32 %v893, 1.442695
    %v895 = vpow.pop %v894
    %v896 = vadd.f32 %v895, 1.0
    %v897 = vrcp.pop %v896
    %v898 = vmul.f32 %v896, %v897
    %v899 = vsub.f32 1.0, %v898
    %v900 = vmul.f32 %v897, %v899
    %v901 = vadd.f32 %v897, %v900
    %vm902 = vweird.f32 %v896
    %vm903 = vweird.f32 %v897
    %vm904 = vmor %vm902, %vm903
    %v905 = vsel %vm904, %v897, %v901
    %v906 = vand.u32 2147483647, %v896
    %vm907 = vcmp.eq.f32.partialorder %v906, 8.507059e+37
    %v908 = vand.u32 %v896, 2147483648
    %v909 = vor.u32 1.1754944e-38, %v908
    %v910 = vsel %vm907, %v909, %v905
    %v911 = vmul.f32 1.0, %v910
    %v912 = vtanh.pop %v872
    %v913 = vxor.u32 %v873, 2147483648
    %v914 = vmul.f32 %v913, 1.442695
    %v915 = vpow.pop %v914
    %v916 = vadd.f32 %v915, 1.0
    %v917 = vrcp.pop %v916
    %v918 = vmul.f32 %v916, %v917
    %v919 = vsub.f32 1.0, %v918
    %v920 = vmul.f32 %v917, %v919
    %v921 = vadd.f32 %v917, %v920
    %vm922 = vweird.f32 %v916
    %vm923 = vweird.f32 %v917
    %vm924 = vmor %vm922, %vm923
    %v925 = vsel %vm924, %v917, %v921
    %v926 = vand.u32 2147483647, %v916
    %vm927 = vcmp.eq.f32.partialorder %v926, 8.507059e+37
    %v928 = vand.u32 %v916, 2147483648
    %v929 = vor.u32 1.1754944e-38, %v928
    %v930 = vsel %vm927, %v929, %v925
    %v931 = vmul.f32 1.0, %v930
    %v933 = vrot.slane %v788, 6
    %v935 = vmul.f32 %v911, %v933
    %v936 = vmul.f32 %v892, %v912
    %v937 = vadd.f32 %v935, %v936
    %v938 = vtanh.pop %v937
    %v939 = vmul.f32 %v931, %v938
    %v940 = vmax.f32 %v939, 0.0
    %942 = vst [vmem:[#allocation1] sm:$0xff] %v940
    %s943 = scalar_lea.vmem [#allocation1], 4
    %v944 = vld [vmem:[%s943] ss:$9 sm:$0xff]
    %s945 = scalar_lea.vmem [#allocation1], 5
    %v946 = vld [vmem:[%s945] ss:$9 sm:$0xff]
    %949 = vst [vmem:[#allocation2 + $0x2] sm:$0x1] %v944
    %950 = vst [vmem:[#allocation2 + $0xa] sm:$0x1] %v946
    %v951 = vpack.c.bf16 %v939, %v939
    %v953 = vrot.slane %v951, 2
    %955 = vmatpush.bf16.msra.mxu0 %v495
    %956 = vmatpush.bf16.msra.mxu0 %v491
    %957 = vmatpush.bf16.msra.mxu0 %v487
    %958 = vmatpush.bf16.msra.mxu0 %v483
    %959 = vmatpush.bf16.msra.mxu0 %v479
    %960 = vmatpush.bf16.msra.mxu0 %v475
    %961 = vmatpush.bf16.msra.mxu0 %v471
    %962 = vmatpush.bf16.msra.mxu0 %v467
    %963 = vmatmul.bf16.gmra.mxu0 %v953
    %v964 = vpop.f32.mrf.mxu0
    %v965 = vadd.f32 0.0, %v964
    %v966 = vpop.f32.mrf.mxu0
    %967 = vdwg.mxu0
    %968 = vmatpush.bf16.msra.mxu0 %v496
    %969 = vmatpush.bf16.msra.mxu0 %v492
    %970 = vmatpush.bf16.msra.mxu0 %v488
    %971 = vmatpush.bf16.msra.mxu0 %v484
    %972 = vmatpush.bf16.msra.mxu0 %v480
    %973 = vmatpush.bf16.msra.mxu0 %v476
    %974 = vmatpush.bf16.msra.mxu0 %v472
    %975 = vmatpush.bf16.msra.mxu0 %v468
    %976 = vmatmul.bf16.gmra.mxu0 %v953
    %v977 = vpop.f32.mrf.mxu0
    %v978 = vadd.f32 0.0, %v977
    %v979 = vpop.f32.mrf.mxu0
    %980 = vdwg.mxu0
    %981 = vmatpush.bf16.msra.mxu0 %v497
    %982 = vmatpush.bf16.msra.mxu0 %v493
    %983 = vmatpush.bf16.msra.mxu0 %v489
    %984 = vmatpush.bf16.msra.mxu0 %v485
    %985 = vmatpush.bf16.msra.mxu0 %v481
    %986 = vmatpush.bf16.msra.mxu0 %v477
    %987 = vmatpush.bf16.msra.mxu0 %v473
    %988 = vmatpush.bf16.msra.mxu0 %v469
    %989 = vmatmul.bf16.gmra.mxu0 %v953
    %v990 = vpop.f32.mrf.mxu0
    %v991 = vadd.f32 0.0, %v990
    %v992 = vpop.f32.mrf.mxu0
    %993 = vdwg.mxu0
    %994 = vmatpush.bf16.msra.mxu0 %v498
    %995 = vmatpush.bf16.msra.mxu0 %v494
    %996 = vmatpush.bf16.msra.mxu0 %v490
    %997 = vmatpush.bf16.msra.mxu0 %v486
    %998 = vmatpush.bf16.msra.mxu0 %v482
    %999 = vmatpush.bf16.msra.mxu0 %v478
    %1000 = vmatpush.bf16.msra.mxu0 %v474
    %1001 = vmatpush.bf16.msra.mxu0 %v470
    %1002 = vmatmul.bf16.gmra.mxu0 %v953
    %v1003 = vpop.f32.mrf.mxu0
    %v1004 = vadd.f32 0.0, %v1003
    %v1005 = vpop.f32.mrf.mxu0
    %1006 = vdwg.mxu0
    %v1011 = vrot.slane %v965, 2
    %v1012 = vrot.slane %v978, 2
    %v1013 = vrot.slane %v991, 2
    %v1014 = vrot.slane %v1004, 2
    %v1019 = vadd.f32 %v290, %v1011
    %v1020 = vadd.f32 %v304, %v1012
    %v1021 = vadd.f32 %v318, %v1013
    %v1022 = vadd.f32 %v332, %v1014
    %v1023 = vxor.u32 %v1019, 2147483648
    %v1024 = vmul.f32 %v1023, 1.442695
    %v1025 = vpow.pop %v1024
    %v1026 = vadd.f32 %v1025, 1.0
    %v1027 = vrcp.pop %v1026
    %v1028 = vmul.f32 %v1026, %v1027
    %v1029 = vsub.f32 1.0, %v1028
    %v1030 = vmul.f32 %v1027, %v1029
    %v1031 = vadd.f32 %v1027, %v1030
    %vm1032 = vweird.f32 %v1026
    %vm1033 = vweird.f32 %v1027
    %vm1034 = vmor %vm1032, %vm1033
    %v1035 = vsel %vm1034, %v1027, %v1031
    %v1036 = vand.u32 2147483647, %v1026
    %vm1037 = vcmp.eq.f32.partialorder %v1036, 8.507059e+37
    %v1038 = vand.u32 %v1026, 2147483648
    %v1039 = vor.u32 1.1754944e-38, %v1038
    %v1040 = vsel %vm1037, %v1039, %v1035
    %v1041 = vmul.f32 1.0, %v1040
    %v1042 = vxor.u32 %v1020, 2147483648
    %v1043 = vmul.f32 %v1042, 1.442695
    %v1044 = vpow.pop %v1043
    %v1045 = vadd.f32 %v1044, 1.0
    %v1046 = vrcp.pop %v1045
    %v1047 = vmul.f32 %v1045, %v1046
    %v1048 = vsub.f32 1.0, %v1047
    %v1049 = vmul.f32 %v1046, %v1048
    %v1050 = vadd.f32 %v1046, %v1049
    %vm1051 = vweird.f32 %v1045
    %vm1052 = vweird.f32 %v1046
    %vm1053 = vmor %vm1051, %vm1052
    %v1054 = vsel %vm1053, %v1046, %v1050
    %v1055 = vand.u32 2147483647, %v1045
    %vm1056 = vcmp.eq.f32.partialorder %v1055, 8.507059e+37
    %v1057 = vand.u32 %v1045, 2147483648
    %v1058 = vor.u32 1.1754944e-38, %v1057
    %v1059 = vsel %vm1056, %v1058, %v1054
    %v1060 = vmul.f32 1.0, %v1059
    %v1061 = vtanh.pop %v1021
    %v1062 = vxor.u32 %v1022, 2147483648
    %v1063 = vmul.f32 %v1062, 1.442695
    %v1064 = vpow.pop %v1063
    %v1065 = vadd.f32 %v1064, 1.0
    %v1066 = vrcp.pop %v1065
    %v1067 = vmul.f32 %v1065, %v1066
    %v1068 = vsub.f32 1.0, %v1067
    %v1069 = vmul.f32 %v1066, %v1068
    %v1070 = vadd.f32 %v1066, %v1069
    %vm1071 = vweird.f32 %v1065
    %vm1072 = vweird.f32 %v1066
    %vm1073 = vmor %vm1071, %vm1072
    %v1074 = vsel %vm1073, %v1066, %v1070
    %v1075 = vand.u32 2147483647, %v1065
    %vm1076 = vcmp.eq.f32.partialorder %v1075, 8.507059e+37
    %v1077 = vand.u32 %v1065, 2147483648
    %v1078 = vor.u32 1.1754944e-38, %v1077
    %v1079 = vsel %vm1076, %v1078, %v1074
    %v1080 = vmul.f32 1.0, %v1079
    %v1082 = vrot.slane %v937, 6
    %v1084 = vmul.f32 %v1060, %v1082
    %v1085 = vmul.f32 %v1041, %v1061
    %v1086 = vadd.f32 %v1084, %v1085
    %v1087 = vtanh.pop %v1086
    %v1088 = vmul.f32 %v1080, %v1087
    %v1089 = vmax.f32 %v1088, 0.0
    %1091 = vst [vmem:[#allocation1] sm:$0xff] %v1089
    %s1092 = scalar_lea.vmem [#allocation1], 6
    %v1093 = vld [vmem:[%s1092] ss:$9 sm:$0xff]
    %s1094 = scalar_lea.vmem [#allocation1], 7
    %v1095 = vld [vmem:[%s1094] ss:$9 sm:$0xff]
    %1098 = vst [vmem:[#allocation2 + $0x3] sm:$0x1] %v1093
    %1099 = vst [vmem:[#allocation2 + $0xb] sm:$0x1] %v1095
    %v1100 = vpack.c.bf16 %v1088, %v1088
    %v1102 = vrot.slane %v1100, 3
    %1104 = vmatpush.bf16.msra.mxu0 %v495
    %1105 = vmatpush.bf16.msra.mxu0 %v491
    %1106 = vmatpush.bf16.msra.mxu0 %v487
    %1107 = vmatpush.bf16.msra.mxu0 %v483
    %1108 = vmatpush.bf16.msra.mxu0 %v479
    %1109 = vmatpush.bf16.msra.mxu0 %v475
    %1110 = vmatpush.bf16.msra.mxu0 %v471
    %1111 = vmatpush.bf16.msra.mxu0 %v467
    %1112 = vmatmul.bf16.gmra.mxu0 %v1102
    %v1113 = vpop.f32.mrf.mxu0
    %v1114 = vadd.f32 0.0, %v1113
    %v1115 = vpop.f32.mrf.mxu0
    %1116 = vdwg.mxu0
    %1117 = vmatpush.bf16.msra.mxu0 %v496
    %1118 = vmatpush.bf16.msra.mxu0 %v492
    %1119 = vmatpush.bf16.msra.mxu0 %v488
    %1120 = vmatpush.bf16.msra.mxu0 %v484
    %1121 = vmatpush.bf16.msra.mxu0 %v480
    %1122 = vmatpush.bf16.msra.mxu0 %v476
    %1123 = vmatpush.bf16.msra.mxu0 %v472
    %1124 = vmatpush.bf16.msra.mxu0 %v468
    %1125 = vmatmul.bf16.gmra.mxu0 %v1102
    %v1126 = vpop.f32.mrf.mxu0
    %v1127 = vadd.f32 0.0, %v1126
    %v1128 = vpop.f32.mrf.mxu0
    %1129 = vdwg.mxu0
    %1130 = vmatpush.bf16.msra.mxu0 %v497
    %1131 = vmatpush.bf16.msra.mxu0 %v493
    %1132 = vmatpush.bf16.msra.mxu0 %v489
    %1133 = vmatpush.bf16.msra.mxu0 %v485
    %1134 = vmatpush.bf16.msra.mxu0 %v481
    %1135 = vmatpush.bf16.msra.mxu0 %v477
    %1136 = vmatpush.bf16.msra.mxu0 %v473
    %1137 = vmatpush.bf16.msra.mxu0 %v469
    %1138 = vmatmul.bf16.gmra.mxu0 %v1102
    %v1139 = vpop.f32.mrf.mxu0
    %v1140 = vadd.f32 0.0, %v1139
    %v1141 = vpop.f32.mrf.mxu0
    %1142 = vdwg.mxu0
    %1143 = vmatpush.bf16.msra.mxu0 %v498
    %1144 = vmatpush.bf16.msra.mxu0 %v494
    %1145 = vmatpush.bf16.msra.mxu0 %v490
    %1146 = vmatpush.bf16.msra.mxu0 %v486
    %1147 = vmatpush.bf16.msra.mxu0 %v482
    %1148 = vmatpush.bf16.msra.mxu0 %v478
    %1149 = vmatpush.bf16.msra.mxu0 %v474
    %1150 = vmatpush.bf16.msra.mxu0 %v470
    %1151 = vmatmul.bf16.gmra.mxu0 %v1102
    %v1152 = vpop.f32.mrf.mxu0
    %v1153 = vadd.f32 0.0, %v1152
    %v1154 = vpop.f32.mrf.mxu0
    %1155 = vdwg.mxu0
    %v1156 = vadd.f32 %v292, %v1114
    %v1157 = vadd.f32 %v306, %v1127
    %v1158 = vadd.f32 %v320, %v1140
    %v1159 = vadd.f32 %v334, %v1153
    %v1160 = vxor.u32 %v1156, 2147483648
    %v1161 = vmul.f32 %v1160, 1.442695
    %v1162 = vpow.pop %v1161
    %v1163 = vadd.f32 %v1162, 1.0
    %v1164 = vrcp.pop %v1163
    %v1165 = vmul.f32 %v1163, %v1164
    %v1166 = vsub.f32 1.0, %v1165
    %v1167 = vmul.f32 %v1164, %v1166
    %v1168 = vadd.f32 %v1164, %v1167
    %vm1169 = vweird.f32 %v1163
    %vm1170 = vweird.f32 %v1164
    %vm1171 = vmor %vm1169, %vm1170
    %v1172 = vsel %vm1171, %v1164, %v1168
    %v1173 = vand.u32 2147483647, %v1163
    %vm1174 = vcmp.eq.f32.partialorder %v1173, 8.507059e+37
    %v1175 = vand.u32 %v1163, 2147483648
    %v1176 = vor.u32 1.1754944e-38, %v1175
    %v1177 = vsel %vm1174, %v1176, %v1172
    %v1178 = vmul.f32 1.0, %v1177
    %v1179 = vxor.u32 %v1157, 2147483648
    %v1180 = vmul.f32 %v1179, 1.442695
    %v1181 = vpow.pop %v1180
    %v1182 = vadd.f32 %v1181, 1.0
    %v1183 = vrcp.pop %v1182
    %v1184 = vmul.f32 %v1182, %v1183
    %v1185 = vsub.f32 1.0, %v1184
    %v1186 = vmul.f32 %v1183, %v1185
    %v1187 = vadd.f32 %v1183, %v1186
    %vm1188 = vweird.f32 %v1182
    %vm1189 = vweird.f32 %v1183
    %vm1190 = vmor %vm1188, %vm1189
    %v1191 = vsel %vm1190, %v1183, %v1187
    %v1192 = vand.u32 2147483647, %v1182
    %vm1193 = vcmp.eq.f32.partialorder %v1192, 8.507059e+37
    %v1194 = vand.u32 %v1182, 2147483648
    %v1195 = vor.u32 1.1754944e-38, %v1194
    %v1196 = vsel %vm1193, %v1195, %v1191
    %v1197 = vmul.f32 1.0, %v1196
    %v1198 = vtanh.pop %v1158
    %v1199 = vxor.u32 %v1159, 2147483648
    %v1200 = vmul.f32 %v1199, 1.442695
    %v1201 = vpow.pop %v1200
    %v1202 = vadd.f32 %v1201, 1.0
    %v1203 = vrcp.pop %v1202
    %v1204 = vmul.f32 %v1202, %v1203
    %v1205 = vsub.f32 1.0, %v1204
    %v1206 = vmul.f32 %v1203, %v1205
    %v1207 = vadd.f32 %v1203, %v1206
    %vm1208 = vweird.f32 %v1202
    %vm1209 = vweird.f32 %v1203
    %vm1210 = vmor %vm1208, %vm1209
    %v1211 = vsel %vm1210, %v1203, %v1207
    %v1212 = vand.u32 2147483647, %v1202
    %vm1213 = vcmp.eq.f32.partialorder %v1212, 8.507059e+37
    %v1214 = vand.u32 %v1202, 2147483648
    %v1215 = vor.u32 1.1754944e-38, %v1214
    %v1216 = vsel %vm1213, %v1215, %v1211
    %v1217 = vmul.f32 1.0, %v1216
    %v1219 = vrot.slane %v1086, 6
    %v1221 = vmul.f32 %v1197, %v1219
    %v1222 = vmul.f32 %v1178, %v1198
    %v1223 = vadd.f32 %v1221, %v1222
    %v1224 = vtanh.pop %v1223
    %v1225 = vmul.f32 %v1217, %v1224
    %v1226 = vmax.f32 %v1225, 0.0
    %v1228 = vrot.slane %v1226, 1
    %1230 = vst [vmem:[#allocation2 + $0x4] sm:$0x1] %v1226
    %1231 = vst [vmem:[#allocation2 + $0xc] sm:$0x1] %v1228
    %v1232 = vpack.c.bf16 %v1225, %v1225
    %1233 = vmatpush.bf16.msra.mxu0 %v495
    %1234 = vmatpush.bf16.msra.mxu0 %v491
    %1235 = vmatpush.bf16.msra.mxu0 %v487
    %1236 = vmatpush.bf16.msra.mxu0 %v483
    %1237 = vmatpush.bf16.msra.mxu0 %v479
    %1238 = vmatpush.bf16.msra.mxu0 %v475
    %1239 = vmatpush.bf16.msra.mxu0 %v471
    %1240 = vmatpush.bf16.msra.mxu0 %v467
    %1241 = vmatmul.bf16.gmra.mxu0 %v1232
    %v1242 = vpop.f32.mrf.mxu0
    %v1243 = vadd.f32 0.0, %v1242
    %v1244 = vpop.f32.mrf.mxu0
    %1245 = vdwg.mxu0
    %1246 = vmatpush.bf16.msra.mxu0 %v496
    %1247 = vmatpush.bf16.msra.mxu0 %v492
    %1248 = vmatpush.bf16.msra.mxu0 %v488
    %1249 = vmatpush.bf16.msra.mxu0 %v484
    %1250 = vmatpush.bf16.msra.mxu0 %v480
    %1251 = vmatpush.bf16.msra.mxu0 %v476
    %1252 = vmatpush.bf16.msra.mxu0 %v472
    %1253 = vmatpush.bf16.msra.mxu0 %v468
    %1254 = vmatmul.bf16.gmra.mxu0 %v1232
    %v1255 = vpop.f32.mrf.mxu0
    %v1256 = vadd.f32 0.0, %v1255
    %v1257 = vpop.f32.mrf.mxu0
    %1258 = vdwg.mxu0
    %1259 = vmatpush.bf16.msra.mxu0 %v497
    %1260 = vmatpush.bf16.msra.mxu0 %v493
    %1261 = vmatpush.bf16.msra.mxu0 %v489
    %1262 = vmatpush.bf16.msra.mxu0 %v485
    %1263 = vmatpush.bf16.msra.mxu0 %v481
    %1264 = vmatpush.bf16.msra.mxu0 %v477
    %1265 = vmatpush.bf16.msra.mxu0 %v473
    %1266 = vmatpush.bf16.msra.mxu0 %v469
    %1267 = vmatmul.bf16.gmra.mxu0 %v1232
    %v1268 = vpop.f32.mrf.mxu0
    %v1269 = vadd.f32 0.0, %v1268
    %v1270 = vpop.f32.mrf.mxu0
    %1271 = vdwg.mxu0
    %1272 = vmatpush.bf16.msra.mxu0 %v498
    %1273 = vmatpush.bf16.msra.mxu0 %v494
    %1274 = vmatpush.bf16.msra.mxu0 %v490
    %1275 = vmatpush.bf16.msra.mxu0 %v486
    %1276 = vmatpush.bf16.msra.mxu0 %v482
    %1277 = vmatpush.bf16.msra.mxu0 %v478
    %1278 = vmatpush.bf16.msra.mxu0 %v474
    %1279 = vmatpush.bf16.msra.mxu0 %v470
    %1280 = vmatmul.bf16.gmra.mxu0 %v1232
    %v1281 = vpop.f32.mrf.mxu0
    %v1282 = vadd.f32 0.0, %v1281
    %v1283 = vpop.f32.mrf.mxu0
    %1284 = vdwg.mxu0
    %v1289 = vrot.slane %v1243, 6
    %v1290 = vrot.slane %v1256, 6
    %v1291 = vrot.slane %v1269, 6
    %v1292 = vrot.slane %v1282, 6
    %v1297 = vadd.f32 %v292, %v1289
    %v1298 = vadd.f32 %v306, %v1290
    %v1299 = vadd.f32 %v320, %v1291
    %v1300 = vadd.f32 %v334, %v1292
    %v1301 = vxor.u32 %v1297, 2147483648
    %v1302 = vmul.f32 %v1301, 1.442695
    %v1303 = vpow.pop %v1302
    %v1304 = vadd.f32 %v1303, 1.0
    %v1305 = vrcp.pop %v1304
    %v1306 = vmul.f32 %v1304, %v1305
    %v1307 = vsub.f32 1.0, %v1306
    %v1308 = vmul.f32 %v1305, %v1307
    %v1309 = vadd.f32 %v1305, %v1308
    %vm1310 = vweird.f32 %v1304
    %vm1311 = vweird.f32 %v1305
    %vm1312 = vmor %vm1310, %vm1311
    %v1313 = vsel %vm1312, %v1305, %v1309
    %v1314 = vand.u32 2147483647, %v1304
    %vm1315 = vcmp.eq.f32.partialorder %v1314, 8.507059e+37
    %v1316 = vand.u32 %v1304, 2147483648
    %v1317 = vor.u32 1.1754944e-38, %v1316
    %v1318 = vsel %vm1315, %v1317, %v1313
    %v1319 = vmul.f32 1.0, %v1318
    %v1320 = vxor.u32 %v1298, 2147483648
    %v1321 = vmul.f32 %v1320, 1.442695
    %v1322 = vpow.pop %v1321
    %v1323 = vadd.f32 %v1322, 1.0
    %v1324 = vrcp.pop %v1323
    %v1325 = vmul.f32 %v1323, %v1324
    %v1326 = vsub.f32 1.0, %v1325
    %v1327 = vmul.f32 %v1324, %v1326
    %v1328 = vadd.f32 %v1324, %v1327
    %vm1329 = vweird.f32 %v1323
    %vm1330 = vweird.f32 %v1324
    %vm1331 = vmor %vm1329, %vm1330
    %v1332 = vsel %vm1331, %v1324, %v1328
    %v1333 = vand.u32 2147483647, %v1323
    %vm1334 = vcmp.eq.f32.partialorder %v1333, 8.507059e+37
    %v1335 = vand.u32 %v1323, 2147483648
    %v1336 = vor.u32 1.1754944e-38, %v1335
    %v1337 = vsel %vm1334, %v1336, %v1332
    %v1338 = vmul.f32 1.0, %v1337
    %v1339 = vtanh.pop %v1299
    %v1340 = vxor.u32 %v1300, 2147483648
    %v1341 = vmul.f32 %v1340, 1.442695
    %v1342 = vpow.pop %v1341
    %v1343 = vadd.f32 %v1342, 1.0
    %v1344 = vrcp.pop %v1343
    %v1345 = vmul.f32 %v1343, %v1344
    %v1346 = vsub.f32 1.0, %v1345
    %v1347 = vmul.f32 %v1344, %v1346
    %v1348 = vadd.f32 %v1344, %v1347
    %vm1349 = vweird.f32 %v1343
    %vm1350 = vweird.f32 %v1344
    %vm1351 = vmor %vm1349, %vm1350
    %v1352 = vsel %vm1351, %v1344, %v1348
    %v1353 = vand.u32 2147483647, %v1343
    %vm1354 = vcmp.eq.f32.partialorder %v1353, 8.507059e+37
    %v1355 = vand.u32 %v1343, 2147483648
    %v1356 = vor.u32 1.1754944e-38, %v1355
    %v1357 = vsel %vm1354, %v1356, %v1352
    %v1358 = vmul.f32 1.0, %v1357
    %v1360 = vrot.slane %v1223, 6
    %v1362 = vmul.f32 %v1338, %v1360
    %v1363 = vmul.f32 %v1319, %v1339
    %v1364 = vadd.f32 %v1362, %v1363
    %v1365 = vtanh.pop %v1364
    %v1366 = vmul.f32 %v1358, %v1365
    %v1367 = vmax.f32 %v1366, 0.0
    %1369 = vst [vmem:[#allocation1] sm:$0xff] %v1367
    %s1370 = scalar_lea.vmem [#allocation1], 2
    %v1371 = vld [vmem:[%s1370] ss:$9 sm:$0xff]
    %s1372 = scalar_lea.vmem [#allocation1], 3
    %v1373 = vld [vmem:[%s1372] ss:$9 sm:$0xff]
    %1376 = vst [vmem:[#allocation2 + $0x5] sm:$0x1] %v1371
    %1377 = vst [vmem:[#allocation2 + $0xd] sm:$0x1] %v1373
    %v1378 = vpack.c.bf16 %v1366, %v1366
    %v1380 = vrot.slane %v1378, 1
    %1382 = vmatpush.bf16.msra.mxu0 %v495
    %1383 = vmatpush.bf16.msra.mxu0 %v491
    %1384 = vmatpush.bf16.msra.mxu0 %v487
    %1385 = vmatpush.bf16.msra.mxu0 %v483
    %1386 = vmatpush.bf16.msra.mxu0 %v479
    %1387 = vmatpush.bf16.msra.mxu0 %v475
    %1388 = vmatpush.bf16.msra.mxu0 %v471
    %1389 = vmatpush.bf16.msra.mxu0 %v467
    %1390 = vmatmul.bf16.gmra.mxu0 %v1380
    %v1391 = vpop.f32.mrf.mxu0
    %v1392 = vadd.f32 0.0, %v1391
    %v1393 = vpop.f32.mrf.mxu0
    %1394 = vdwg.mxu0
    %1395 = vmatpush.bf16.msra.mxu0 %v496
    %1396 = vmatpush.bf16.msra.mxu0 %v492
    %1397 = vmatpush.bf16.msra.mxu0 %v488
    %1398 = vmatpush.bf16.msra.mxu0 %v484
    %1399 = vmatpush.bf16.msra.mxu0 %v480
    %1400 = vmatpush.bf16.msra.mxu0 %v476
    %1401 = vmatpush.bf16.msra.mxu0 %v472
    %1402 = vmatpush.bf16.msra.mxu0 %v468
    %1403 = vmatmul.bf16.gmra.mxu0 %v1380
    %v1404 = vpop.f32.mrf.mxu0
    %v1405 = vadd.f32 0.0, %v1404
    %v1406 = vpop.f32.mrf.mxu0
    %1407 = vdwg.mxu0
    %1408 = vmatpush.bf16.msra.mxu0 %v497
    %1409 = vmatpush.bf16.msra.mxu0 %v493
    %1410 = vmatpush.bf16.msra.mxu0 %v489
    %1411 = vmatpush.bf16.msra.mxu0 %v485
    %1412 = vmatpush.bf16.msra.mxu0 %v481
    %1413 = vmatpush.bf16.msra.mxu0 %v477
    %1414 = vmatpush.bf16.msra.mxu0 %v473
    %1415 = vmatpush.bf16.msra.mxu0 %v469
    %1416 = vmatmul.bf16.gmra.mxu0 %v1380
    %v1417 = vpop.f32.mrf.mxu0
    %v1418 = vadd.f32 0.0, %v1417
    %v1419 = vpop.f32.mrf.mxu0
    %1420 = vdwg.mxu0
    %1421 = vmatpush.bf16.msra.mxu0 %v498
    %1422 = vmatpush.bf16.msra.mxu0 %v494
    %1423 = vmatpush.bf16.msra.mxu0 %v490
    %1424 = vmatpush.bf16.msra.mxu0 %v486
    %1425 = vmatpush.bf16.msra.mxu0 %v482
    %1426 = vmatpush.bf16.msra.mxu0 %v478
    %1427 = vmatpush.bf16.msra.mxu0 %v474
    %1428 = vmatpush.bf16.msra.mxu0 %v470
    %1429 = vmatmul.bf16.gmra.mxu0 %v1380
    %v1430 = vpop.f32.mrf.mxu0
    %v1431 = vadd.f32 0.0, %v1430
    %v1432 = vpop.f32.mrf.mxu0
    %1433 = vdwg.mxu0
    %v1438 = vrot.slane %v1392, 4
    %v1439 = vrot.slane %v1405, 4
    %v1440 = vrot.slane %v1418, 4
    %v1441 = vrot.slane %v1431, 4
    %v1446 = vadd.f32 %v292, %v1438
    %v1447 = vadd.f32 %v306, %v1439
    %v1448 = vadd.f32 %v320, %v1440
    %v1449 = vadd.f32 %v334, %v1441
    %v1450 = vxor.u32 %v1446, 2147483648
    %v1451 = vmul.f32 %v1450, 1.442695
    %v1452 = vpow.pop %v1451
    %v1453 = vadd.f32 %v1452, 1.0
    %v1454 = vrcp.pop %v1453
    %v1455 = vmul.f32 %v1453, %v1454
    %v1456 = vsub.f32 1.0, %v1455
    %v1457 = vmul.f32 %v1454, %v1456
    %v1458 = vadd.f32 %v1454, %v1457
    %vm1459 = vweird.f32 %v1453
    %vm1460 = vweird.f32 %v1454
    %vm1461 = vmor %vm1459, %vm1460
    %v1462 = vsel %vm1461, %v1454, %v1458
    %v1463 = vand.u32 2147483647, %v1453
    %vm1464 = vcmp.eq.f32.partialorder %v1463, 8.507059e+37
    %v1465 = vand.u32 %v1453, 2147483648
    %v1466 = vor.u32 1.1754944e-38, %v1465
    %v1467 = vsel %vm1464, %v1466, %v1462
    %v1468 = vmul.f32 1.0, %v1467
    %v1469 = vxor.u32 %v1447, 2147483648
    %v1470 = vmul.f32 %v1469, 1.442695
    %v1471 = vpow.pop %v1470
    %v1472 = vadd.f32 %v1471, 1.0
    %v1473 = vrcp.pop %v1472
    %v1474 = vmul.f32 %v1472, %v1473
    %v1475 = vsub.f32 1.0, %v1474
    %v1476 = vmul.f32 %v1473, %v1475
    %v1477 = vadd.f32 %v1473, %v1476
    %vm1478 = vweird.f32 %v1472
    %vm1479 = vweird.f32 %v1473
    %vm1480 = vmor %vm1478, %vm1479
    %v1481 = vsel %vm1480, %v1473, %v1477
    %v1482 = vand.u32 2147483647, %v1472
    %vm1483 = vcmp.eq.f32.partialorder %v1482, 8.507059e+37
    %v1484 = vand.u32 %v1472, 2147483648
    %v1485 = vor.u32 1.1754944e-38, %v1484
    %v1486 = vsel %vm1483, %v1485, %v1481
    %v1487 = vmul.f32 1.0, %v1486
    %v1488 = vtanh.pop %v1448
    %v1489 = vxor.u32 %v1449, 2147483648
    %v1490 = vmul.f32 %v1489, 1.442695
    %v1491 = vpow.pop %v1490
    %v1492 = vadd.f32 %v1491, 1.0
    %v1493 = vrcp.pop %v1492
    %v1494 = vmul.f32 %v1492, %v1493
    %v1495 = vsub.f32 1.0, %v1494
    %v1496 = vmul.f32 %v1493, %v1495
    %v1497 = vadd.f32 %v1493, %v1496
    %vm1498 = vweird.f32 %v1492
    %vm1499 = vweird.f32 %v1493
    %vm1500 = vmor %vm1498, %vm1499
    %v1501 = vsel %vm1500, %v1493, %v1497
    %v1502 = vand.u32 2147483647, %v1492
    %vm1503 = vcmp.eq.f32.partialorder %v1502, 8.507059e+37
    %v1504 = vand.u32 %v1492, 2147483648
    %v1505 = vor.u32 1.1754944e-38, %v1504
    %v1506 = vsel %vm1503, %v1505, %v1501
    %v1507 = vmul.f32 1.0, %v1506
    %v1509 = vrot.slane %v1364, 6
    %v1511 = vmul.f32 %v1487, %v1509
    %v1512 = vmul.f32 %v1468, %v1488
    %v1513 = vadd.f32 %v1511, %v1512
    %v1514 = vtanh.pop %v1513
    %v1515 = vmul.f32 %v1507, %v1514
    %v1516 = vmax.f32 %v1515, 0.0
    %1518 = vst [vmem:[#allocation1] sm:$0xff] %v1516
    %s1519 = scalar_lea.vmem [#allocation1], 4
    %v1520 = vld [vmem:[%s1519] ss:$9 sm:$0xff]
    %s1521 = scalar_lea.vmem [#allocation1], 5
    %v1522 = vld [vmem:[%s1521] ss:$9 sm:$0xff]
    %1525 = vst [vmem:[#allocation2 + $0x6] sm:$0x1] %v1520
    %1526 = vst [vmem:[#allocation2 + $0xe] sm:$0x1] %v1522
    %v1527 = vpack.c.bf16 %v1515, %v1515
    %v1529 = vrot.slane %v1527, 2
    %1531 = vmatpush.bf16.msra.mxu0 %v495
    %1532 = vmatpush.bf16.msra.mxu0 %v491
    %1533 = vmatpush.bf16.msra.mxu0 %v487
    %1534 = vmatpush.bf16.msra.mxu0 %v483
    %1535 = vmatpush.bf16.msra.mxu0 %v479
    %1536 = vmatpush.bf16.msra.mxu0 %v475
    %1537 = vmatpush.bf16.msra.mxu0 %v471
    %1538 = vmatpush.bf16.msra.mxu0 %v467
    %1539 = vmatmul.bf16.gmra.mxu0 %v1529
    %v1540 = vpop.f32.mrf.mxu0
    %v1541 = vadd.f32 0.0, %v1540
    %v1542 = vpop.f32.mrf.mxu0
    %1543 = vdwg.mxu0
    %1544 = vmatpush.bf16.msra.mxu0 %v496
    %1545 = vmatpush.bf16.msra.mxu0 %v492
    %1546 = vmatpush.bf16.msra.mxu0 %v488
    %1547 = vmatpush.bf16.msra.mxu0 %v484
    %1548 = vmatpush.bf16.msra.mxu0 %v480
    %1549 = vmatpush.bf16.msra.mxu0 %v476
    %1550 = vmatpush.bf16.msra.mxu0 %v472
    %1551 = vmatpush.bf16.msra.mxu0 %v468
    %1552 = vmatmul.bf16.gmra.mxu0 %v1529
    %v1553 = vpop.f32.mrf.mxu0
    %v1554 = vadd.f32 0.0, %v1553
    %v1555 = vpop.f32.mrf.mxu0
    %1556 = vdwg.mxu0
    %1557 = vmatpush.bf16.msra.mxu0 %v497
    %1558 = vmatpush.bf16.msra.mxu0 %v493
    %1559 = vmatpush.bf16.msra.mxu0 %v489
    %1560 = vmatpush.bf16.msra.mxu0 %v485
    %1561 = vmatpush.bf16.msra.mxu0 %v481
    %1562 = vmatpush.bf16.msra.mxu0 %v477
    %1563 = vmatpush.bf16.msra.mxu0 %v473
    %1564 = vmatpush.bf16.msra.mxu0 %v469
    %1565 = vmatmul.bf16.gmra.mxu0 %v1529
    %v1566 = vpop.f32.mrf.mxu0
    %v1567 = vadd.f32 0.0, %v1566
    %v1568 = vpop.f32.mrf.mxu0
    %1569 = vdwg.mxu0
    %1570 = vmatpush.bf16.msra.mxu0 %v498
    %1571 = vmatpush.bf16.msra.mxu0 %v494
    %1572 = vmatpush.bf16.msra.mxu0 %v490
    %1573 = vmatpush.bf16.msra.mxu0 %v486
    %1574 = vmatpush.bf16.msra.mxu0 %v482
    %1575 = vmatpush.bf16.msra.mxu0 %v478
    %1576 = vmatpush.bf16.msra.mxu0 %v474
    %1577 = vmatpush.bf16.msra.mxu0 %v470
    %1578 = vmatmul.bf16.gmra.mxu0 %v1529
    %v1579 = vpop.f32.mrf.mxu0
    %v1580 = vadd.f32 0.0, %v1579
    %v1581 = vpop.f32.mrf.mxu0
    %1582 = vdwg.mxu0
    %v1587 = vrot.slane %v1541, 2
    %v1588 = vrot.slane %v1554, 2
    %v1589 = vrot.slane %v1567, 2
    %v1590 = vrot.slane %v1580, 2
    %v1595 = vadd.f32 %v292, %v1587
    %v1596 = vadd.f32 %v306, %v1588
    %v1597 = vadd.f32 %v320, %v1589
    %v1598 = vadd.f32 %v334, %v1590
    %v1599 = vxor.u32 %v1595, 2147483648
    %v1600 = vmul.f32 %v1599, 1.442695
    %v1601 = vpow.pop %v1600
    %v1602 = vadd.f32 %v1601, 1.0
    %v1603 = vrcp.pop %v1602
    %v1604 = vmul.f32 %v1602, %v1603
    %v1605 = vsub.f32 1.0, %v1604
    %v1606 = vmul.f32 %v1603, %v1605
    %v1607 = vadd.f32 %v1603, %v1606
    %vm1608 = vweird.f32 %v1602
    %vm1609 = vweird.f32 %v1603
    %vm1610 = vmor %vm1608, %vm1609
    %v1611 = vsel %vm1610, %v1603, %v1607
    %v1612 = vand.u32 2147483647, %v1602
    %vm1613 = vcmp.eq.f32.partialorder %v1612, 8.507059e+37
    %v1614 = vand.u32 %v1602, 2147483648
    %v1615 = vor.u32 1.1754944e-38, %v1614
    %v1616 = vsel %vm1613, %v1615, %v1611
    %v1617 = vmul.f32 1.0, %v1616
    %v1618 = vxor.u32 %v1596, 2147483648
    %v1619 = vmul.f32 %v1618, 1.442695
    %v1620 = vpow.pop %v1619
    %v1621 = vadd.f32 %v1620, 1.0
    %v1622 = vrcp.pop %v1621
    %v1623 = vmul.f32 %v1621, %v1622
    %v1624 = vsub.f32 1.0, %v1623
    %v1625 = vmul.f32 %v1622, %v1624
    %v1626 = vadd.f32 %v1622, %v1625
    %vm1627 = vweird.f32 %v1621
    %vm1628 = vweird.f32 %v1622
    %vm1629 = vmor %vm1627, %vm1628
    %v1630 = vsel %vm1629, %v1622, %v1626
    %v1631 = vand.u32 2147483647, %v1621
    %vm1632 = vcmp.eq.f32.partialorder %v1631, 8.507059e+37
    %v1633 = vand.u32 %v1621, 2147483648
    %v1634 = vor.u32 1.1754944e-38, %v1633
    %v1635 = vsel %vm1632, %v1634, %v1630
    %v1636 = vmul.f32 1.0, %v1635
    %v1637 = vtanh.pop %v1597
    %v1638 = vxor.u32 %v1598, 2147483648
    %v1639 = vmul.f32 %v1638, 1.442695
    %v1640 = vpow.pop %v1639
    %v1641 = vadd.f32 %v1640, 1.0
    %v1642 = vrcp.pop %v1641
    %v1643 = vmul.f32 %v1641, %v1642
    %v1644 = vsub.f32 1.0, %v1643
    %v1645 = vmul.f32 %v1642, %v1644
    %v1646 = vadd.f32 %v1642, %v1645
    %vm1647 = vweird.f32 %v1641
    %vm1648 = vweird.f32 %v1642
    %vm1649 = vmor %vm1647, %vm1648
    %v1650 = vsel %vm1649, %v1642, %v1646
    %v1651 = vand.u32 2147483647, %v1641
    %vm1652 = vcmp.eq.f32.partialorder %v1651, 8.507059e+37
    %v1653 = vand.u32 %v1641, 2147483648
    %v1654 = vor.u32 1.1754944e-38, %v1653
    %v1655 = vsel %vm1652, %v1654, %v1650
    %v1656 = vmul.f32 1.0, %v1655
    %v1658 = vrot.slane %v1513, 6
    %v1660 = vmul.f32 %v1636, %v1658
    %v1661 = vmul.f32 %v1617, %v1637
    %v1662 = vadd.f32 %v1660, %v1661
    %v1663 = vtanh.pop %v1662
    %v1664 = vmul.f32 %v1656, %v1663
    %v1665 = vmax.f32 %v1664, 0.0
    %1667 = vst [vmem:[#allocation1] sm:$0xff] %v1665
    %s1668 = scalar_lea.vmem [#allocation1], 6
    %v1669 = vld [vmem:[%s1668] ss:$9 sm:$0xff]
    %s1670 = scalar_lea.vmem [#allocation1], 7
    %v1671 = vld [vmem:[%s1670] ss:$9 sm:$0xff]
    %1674 = vst [vmem:[#allocation2 + $0x7] sm:$0x1] %v1669
    %1675 = vst [vmem:[#allocation2 + $0xf] sm:$0x1] %v1671
    %v1676 = vld [vmem:[#allocation2] sm:$0xff]
    %v1677 = vld [vmem:[#allocation2 + $0x8] sm:$0xff]
    %v1678 = vpack.c.bf16 %v1677, %v1676
    %v1679 = vld [vmem:[%s8] sm:$0xf]
    %v1680 = vld [vmem:[%s8 + $0x4] sm:$0xf]
    %v1681 = vld [vmem:[%s8 + $0x8] sm:$0xf]
    %v1682 = vld [vmem:[%s8 + $0xc] sm:$0xf]
    %v1683 = vld [vmem:[%s8 + $0x10] sm:$0xf]
    %v1684 = vld [vmem:[%s8 + $0x14] sm:$0xf]
    %v1685 = vld [vmem:[%s8 + $0x18] sm:$0xf]
    %v1686 = vld [vmem:[%s8 + $0x1c] sm:$0xf]
    %v1687 = vld [vmem:[%s8 + $0x20] sm:$0xf]
    %v1688 = vld [vmem:[%s8 + $0x24] sm:$0xf]
    %v1689 = vld [vmem:[%s8 + $0x28] sm:$0xf]
    %v1690 = vld [vmem:[%s8 + $0x2c] sm:$0xf]
    %v1691 = vld [vmem:[%s8 + $0x30] sm:$0xf]
    %v1692 = vld [vmem:[%s8 + $0x34] sm:$0xf]
    %v1693 = vld [vmem:[%s8 + $0x38] sm:$0xf]
    %v1694 = vld [vmem:[%s8 + $0x3c] sm:$0xf]
    %v1695 = vld [vmem:[%s9] sm:$0x1]
    %v1697 = vperm.slane %v1695, 0
    %v1715 = vunpack.c.l.b16 %v1679
    %v1716 = vunpack.c.l.b16 %v1680
    %v1717 = vunpack.c.l.b16 %v1681
    %v1718 = vunpack.c.l.b16 %v1682
    %v1719 = vunpack.c.l.b16 %v1683
    %v1720 = vunpack.c.l.b16 %v1684
    %v1721 = vunpack.c.l.b16 %v1685
    %v1722 = vunpack.c.l.b16 %v1686
    %v1723 = vunpack.c.l.b16 %v1687
    %v1724 = vunpack.c.l.b16 %v1688
    %v1725 = vunpack.c.l.b16 %v1689
    %v1726 = vunpack.c.l.b16 %v1690
    %v1727 = vunpack.c.l.b16 %v1691
    %v1728 = vunpack.c.l.b16 %v1692
    %v1729 = vunpack.c.l.b16 %v1693
    %v1730 = vunpack.c.l.b16 %v1694
    %v1731 = vpack.c.b16 %v1716, %v1715
    %v1732 = vpack.c.b16 %v1718, %v1717
    %v1733 = vpack.c.b16 %v1720, %v1719
    %v1734 = vpack.c.b16 %v1722, %v1721
    %v1735 = vpack.c.b16 %v1724, %v1723
    %v1736 = vpack.c.b16 %v1726, %v1725
    %v1737 = vpack.c.b16 %v1728, %v1727
    %v1738 = vpack.c.b16 %v1730, %v1729
    %1747 = vmatpush.bf16.msra.mxu0 %v1738
    %1748 = vmatpush.bf16.msra.mxu0 %v1737
    %1749 = vmatpush.bf16.msra.mxu0 %v1736
    %1750 = vmatpush.bf16.msra.mxu0 %v1735
    %1751 = vmatpush.bf16.msra.mxu0 %v1734
    %1752 = vmatpush.bf16.msra.mxu0 %v1733
    %1753 = vmatpush.bf16.msra.mxu0 %v1732
    %1754 = vmatpush.bf16.msra.mxu0 %v1731
    %1755 = vmatmul.bf16.gmra.mxu0 %v1678
    %v1756 = vpop.f32.mrf.mxu0
    %v1757 = vadd.f32 %v1697, %v1756
    %v1758 = vpop.f32.mrf.mxu0
    %v1759 = vadd.f32 %v1697, %v1758
    %1760 = vdwg.mxu0
    %vm1761 = vcmask 31744
    %v1762 = vsel %vm1761, %v1757, -inf
    %1763 = vmax.xlane.f32.xlu0 %v1762
    %v1764 = vpop.xlane.xlu0 %1763
    %v1765 = vrot.slane %v1764, 4
    %v1766 = vmax.f32 %v1764, %v1765
    %v1767 = vrot.slane %v1766, 2
    %v1768 = vmax.f32 %v1766, %v1767
    %v1769 = vrot.slane %v1768, 1
    %v1770 = vmax.f32 %v1768, %v1769
    %v1771 = vsub.f32 %v1757, %v1770
    %v1772 = vmul.f32 %v1771, 1.442695
    %v1773 = vpow.pop %v1772
    %v1774 = vsel %vm1761, %v1773, 0.0
    %1775 = vadd.xlane.f32.xlu0 %v1774
    %v1776 = vpop.xlane.xlu0 %1775
    %v1777 = vrot.slane %v1776, 4
    %v1778 = vadd.f32 %v1776, %v1777
    %v1779 = vrot.slane %v1778, 2
    %v1780 = vadd.f32 %v1778, %v1779
    %v1781 = vrot.slane %v1780, 1
    %v1782 = vadd.f32 %v1780, %v1781
    %v1783 = vrcp.pop %v1782
    %v1784 = vmul.f32 %v1773, %v1783
    %1785 = vst.msk [vmem:[%s10] sm:$0xff] %vm1761, %v1784
    %v1786 = vsel %vm1761, %v1759, -inf
    %1787 = vmax.xlane.f32.xlu0 %v1786
    %v1788 = vpop.xlane.xlu0 %1787
    %v1789 = vrot.slane %v1788, 4
    %v1790 = vmax.f32 %v1788, %v1789
    %v1791 = vrot.slane %v1790, 2
    %v1792 = vmax.f32 %v1790, %v1791
    %v1793 = vrot.slane %v1792, 1
    %v1794 = vmax.f32 %v1792, %v1793
    %v1795 = vsub.f32 %v1759, %v1794
    %v1796 = vmul.f32 %v1795, 1.442695
    %v1797 = vpow.pop %v1796
    %v1798 = vsel %vm1761, %v1797, 0.0
    %1799 = vadd.xlane.f32.xlu0 %v1798
    %v1800 = vpop.xlane.xlu0 %1799
    %v1801 = vrot.slane %v1800, 4
    %v1802 = vadd.f32 %v1800, %v1801
    %v1803 = vrot.slane %v1802, 2
    %v1804 = vadd.f32 %v1802, %v1803
    %v1805 = vrot.slane %v1804, 1
    %v1806 = vadd.f32 %v1804, %v1805
    %v1807 = vrcp.pop %v1806
    %v1808 = vmul.f32 %v1797, %v1807
    %s1809 = scalar_lea.vmem %s10, 8
    %1810 = vst.msk [vmem:[%s1809] sm:$0xff] %vm1761, %v1808
    %1813 = vrot.lane.b32.xlu0 %v1757, 124
    %v1814 = vpop.permute.xlu0 %1813
    %1815 = vrot.lane.b32.xlu0 %v1759, 124
    %v1816 = vpop.permute.xlu0 %1815
    %vm1819 = vcmask 7168
    %1820 = vst.msk [vmem:[%s11] sm:$0xff] %vm1819, %v1814
    %1821 = vst.msk [vmem:[%s11 + $0x8] sm:$0xff] %vm1819, %v1816
    %1822 = vst [vmem:[#allocation3 - $0x6] sm:$0xc0] %v1664
    %1823 = vst [vmem:[#allocation5 - $0x6] sm:$0xc0] %v1662
    // Predicated region
    $region42: #{actor_critic_pfn.1} parent=1 // pred_check
      _
    $region43: #{actor_critic_pfn.1} parent=1 // pred_check_branch
      %1825 = sbr.rel (0) target = $region45
    $region44: #{actor_critic_pfn.1} parent=1 // pred_region
      _
    $region45: #{actor_critic_pfn.1} parent=1 // pred_fallthru
      _
    // Predicated region
    $region46: #{actor_critic_pfn.1} parent=1 // pred_check
      _
    $region47: #{actor_critic_pfn.1} parent=1 // pred_check_branch
      %1827 = sbr.rel (0) target = $region49
    $region48: #{actor_critic_pfn.1} parent=1 // pred_region
      _
    $region49: #{actor_critic_pfn.1} parent=1 // pred_fallthru
      _
    // Predicated region
    $region50: #{actor_critic_pfn.1} parent=1 // pred_check
      _
    $region51: #{actor_critic_pfn.1} parent=1 // pred_check_branch
      %1829 = sbr.rel (0) target = $region53
    $region52: #{actor_critic_pfn.1} parent=1 // pred_region
      %1831 = vsyncadd [#allocation4], 0
      %s1833 = sshll.u32 [#allocation3], 4
      %s1834 = int_to_ptr.vmem [resolvable:$true] %s1833
      %s1835 = sshll.u32 %s12, 4
      %s1836 = int_to_ptr.hbm [resolvable:$true] %s1835
      %1838 = dma.vmem_to_hbm [thread:$0]  %s1834, 32, %s1836, [#allocation4]
    $region53: #{actor_critic_pfn.1} parent=1 // pred_fallthru
      _
    // Predicated region
    $region54: #{actor_critic_pfn.1} parent=1 // pred_check
      _
    $region55: #{actor_critic_pfn.1} parent=1 // pred_check_branch
      %1840 = sbr.rel (0) target = $region57
    $region56: #{actor_critic_pfn.1} parent=1 // pred_region
      %1842 = vsyncadd [#allocation6], 0
      %s1844 = sshll.u32 [#allocation5], 4
      %s1845 = int_to_ptr.vmem [resolvable:$true] %s1844
      %s1846 = sshll.u32 %s13, 4
      %s1847 = int_to_ptr.hbm [resolvable:$true] %s1846
      %1849 = dma.vmem_to_hbm [thread:$0]  %s1845, 32, %s1847, [#allocation6]
    $region57: #{actor_critic_pfn.1} parent=1 // pred_fallthru
      _
    // Predicated region
    $region58: #{actor_critic_pfn.1} parent=1 // pred_check
      _
    $region59: #{actor_critic_pfn.1} parent=1 // pred_check_branch
      %1851 = sbr.rel (0) target = $region61
    $region60: #{actor_critic_pfn.1} parent=1 // pred_region
      _
    $region61: #{actor_critic_pfn.1} parent=1 // pred_fallthru
      _
    // Predicated region
    $region62: #{actor_critic_pfn.1} parent=1 // pred_check
      _
    $region63: #{actor_critic_pfn.1} parent=1 // pred_check_branch
      %1853 = sbr.rel (0) target = $region65
    $region64: #{actor_critic_pfn.1} parent=1 // pred_region
      _
    $region65: #{actor_critic_pfn.1} parent=1 // pred_fallthru
      _
    // Predicated region
    $region66: #{actor_critic_pfn.1} parent=1 // pred_check
      _
    $region67: #{actor_critic_pfn.1} parent=1 // pred_check_branch
      %1855 = sbr.rel (0) target = $region69
    $region68: #{actor_critic_pfn.1} parent=1 // pred_region
      %1857 = dma.done [#allocation4], 32
    $region69: #{actor_critic_pfn.1} parent=1 // pred_fallthru
      _
    // Predicated region
    $region70: #{actor_critic_pfn.1} parent=1 // pred_check
      _
    $region71: #{actor_critic_pfn.1} parent=1 // pred_check_branch
      %1859 = sbr.rel (0) target = $region73
    $region72: #{actor_critic_pfn.1} parent=1 // pred_region
      %1861 = dma.done [#allocation6], 32
    $region73: #{actor_critic_pfn.1} parent=1 // pred_fallthru
      _
    %1862 = vsyncpa [#allocation4], 1
    %1863 = vsyncpa [#allocation6], 1

</llo_original>
